<compile_context>
chip_gen: v7x
topology: tpu7x:2x2x1
jax: 0.10.0
libtpu: 0.0.40
codegen_flags: <defaults>
</compile_context>

<pallas_src>
import functools
import math

import jax
import jax.numpy as jnp
from jax.experimental import pallas as pl
from jax.experimental.pallas import tpu as pltpu

EPS = 1e-5
NEG_INF = -1e30     # large finite negative mask bias (avoids inf-inf -> NaN)


def _pick_tile(dim, target, align):
    """Largest tile <= target (multiple of `align`) that divides `dim`.
    If the whole dim fits the target, use the full dim (also satisfies the
    Mosaic block-shape rule 'multiple of (8,128) OR full array dim')."""
    if dim <= target:
        return dim
    t = (target // align) * align
    while t >= align:
        if dim % t == 0:
            return t
        t -= align
    return dim   # fallback: no tiling along this axis


# ------------------ fused residual-add + RMSNorm + matmul --------------------

def _norm_matmul_kernel(x_ref, res_ref, nw_ref, w_ref, y_ref, newres_ref,
                        normed_sc, *, eps):
    j = pl.program_id(1)

    @pl.when(j == 0)
    def _():
        total = x_ref[...].astype(jnp.float32) + res_ref[...].astype(jnp.float32)
        newres_ref[...] = total                                   # residual_in_fp32
        var = jnp.mean(total * total, axis=-1, keepdims=True)
        normed_sc[...] = total * jax.lax.rsqrt(var + eps) * nw_ref[...].astype(jnp.float32)

    y_ref[...] = jnp.dot(normed_sc[...], w_ref[...],
                         preferred_element_type=jnp.float32).astype(y_ref.dtype)


def _norm_matmul_nores_kernel(x_ref, nw_ref, w_ref, y_ref, newres_ref,
                              normed_sc, *, eps):
    j = pl.program_id(1)

    @pl.when(j == 0)
    def _():
        total = x_ref[...].astype(jnp.float32)
        newres_ref[...] = total
        var = jnp.mean(total * total, axis=-1, keepdims=True)
        normed_sc[...] = total * jax.lax.rsqrt(var + eps) * nw_ref[...].astype(jnp.float32)

    y_ref[...] = jnp.dot(normed_sc[...], w_ref[...],
                         preferred_element_type=jnp.float32).astype(y_ref.dtype)


def fused_norm_matmul(x, residual, norm_w, w, *, tm_target=256, tn_target=512):
    """Returns (RMSNorm(x [+ residual]) @ w, new fp32 residual)."""
    M, D = x.shape
    N = w.shape[1]
    tm = _pick_tile(M, tm_target, 8)
    tn = _pick_tile(N, tn_target, 128)
    grid = (M // tm, N // tn)
    nw2d = norm_w.reshape(1, D)
    common = dict(
        out_shape=(jax.ShapeDtypeStruct((M, N), x.dtype),
                   jax.ShapeDtypeStruct((M, D), jnp.float32)),
        grid=grid,
        out_specs=(pl.BlockSpec((tm, tn), lambda i, j: (i, j)),
                   pl.BlockSpec((tm, D), lambda i, j: (i, 0))),
        scratch_shapes=[pltpu.VMEM((tm, D), jnp.float32)],
        compiler_params=pltpu.CompilerParams(
            dimension_semantics=("parallel", "arbitrary")),
    )
    if residual is None:
        # first layer: skip the residual stream entirely (no zeros tensor)
        return pl.pallas_call(
            functools.partial(_norm_matmul_nores_kernel, eps=EPS),
            in_specs=[pl.BlockSpec((tm, D), lambda i, j: (i, 0)),
                      pl.BlockSpec((1, D), lambda i, j: (0, 0)),
                      pl.BlockSpec((D, tn), lambda i, j: (0, j))],
            **common,
        )(x, nw2d, w)
    return pl.pallas_call(
        functools.partial(_norm_matmul_kernel, eps=EPS),
        in_specs=[pl.BlockSpec((tm, D), lambda i, j: (i, 0)),
                  pl.BlockSpec((tm, D), lambda i, j: (i, 0)),
                  pl.BlockSpec((1, D), lambda i, j: (0, 0)),
                  pl.BlockSpec((D, tn), lambda i, j: (0, j))],
        input_output_aliases={1: 1},     # new residual overwrites old residual buffer
        **common,
    )(x, residual, nw2d, w)


# --------- causal flash attention fused with the output projection ----------

def _flash_attn_wout_kernel(q_ref, k_ref, v_ref, wo_ref, o_ref,
                            m_sc, l_sc, acc_sc, out_sc, *, scale):
    qi = pl.program_id(1)
    h = pl.program_id(2)
    ki = pl.program_id(3)
    nh = pl.num_programs(2)
    nkv = pl.num_programs(3)
    tq = q_ref.shape[2]
    tkv = k_ref.shape[2]

    @pl.when(ki == 0)
    def _():
        m_sc[...] = jnp.full_like(m_sc, NEG_INF)
        l_sc[...] = jnp.zeros_like(l_sc)
        acc_sc[...] = jnp.zeros_like(acc_sc)

    @pl.when((ki == 0) & (h == 0))
    def _():
        out_sc[...] = jnp.zeros_like(out_sc)

    # Skip KV tiles entirely above the causal diagonal of this Q tile.
    @pl.when(ki * tkv <= qi * tq + (tq - 1))
    def _():
        q = q_ref[0, 0].astype(jnp.float32) * scale               # scale q (tq,Dh)
        k = k_ref[0, 0].astype(jnp.float32)
        v = v_ref[0, 0].astype(jnp.float32)
        # contract last dims directly (no k.T / XLU transpose)
        s = jax.lax.dot_general(q, k, (((1,), (1,)), ((), ())),
                                preferred_element_type=jnp.float32)   # (tq, tkv)
        row = qi * tq + jax.lax.broadcasted_iota(jnp.int32, (tq, tkv), 0)
        col = ki * tkv + jax.lax.broadcasted_iota(jnp.int32, (tq, tkv), 1)
        s = jnp.where(col <= row, s, NEG_INF)
        m_new = jnp.maximum(m_sc[...], jnp.max(s, axis=-1, keepdims=True))
        alpha = jnp.exp(m_sc[...] - m_new)
        p = jnp.exp(s - m_new)
        l_sc[...] = alpha * l_sc[...] + jnp.sum(p, axis=-1, keepdims=True)
        acc_sc[...] = alpha * acc_sc[...] + jnp.dot(p, v,
                                                    preferred_element_type=jnp.float32)
        m_sc[...] = m_new

    # per-head epilogue: o_h = softmax(QK^T)V, accumulate o_h @ Wout[h*Dh:(h+1)*Dh]
    @pl.when(ki == nkv - 1)
    def _():
        o_head = acc_sc[...] * pl.reciprocal(l_sc[...], approx=True)   # (tq, Dh)
        out_sc[...] += jnp.dot(o_head, wo_ref[...],
                               preferred_element_type=jnp.float32)

    @pl.when((ki == nkv - 1) & (h == nh - 1))
    def _():
        o_ref[0] = out_sc[...].astype(o_ref.dtype)   # lane-dense (tq, D) store


def flash_attention_wout(q, k, v, wout, *, tq_target=256, tkv_target=256):
    """q,k,v: (B, H, L, Dh); wout: (H*Dh, D).  Returns attention @ wout: (B, L, D)."""
    B, H, L, Dh = q.shape
    D = wout.shape[1]
    assert wout.shape[0] == H * Dh
    scale = 1.0 / math.sqrt(Dh)
    tq = _pick_tile(L, tq_target, 8)
    tkv = _pick_tile(L, tkv_target, 8)
    grid = (B, L // tq, H, L // tkv)
    q_spec = pl.BlockSpec((1, 1, tq, Dh), lambda b, qi, h, ki: (b, h, qi, 0))
    kv_spec = pl.BlockSpec((1, 1, tkv, Dh), lambda b, qi, h, ki: (b, h, ki, 0))
    return pl.pallas_call(
        functools.partial(_flash_attn_wout_kernel, scale=scale),
        out_shape=jax.ShapeDtypeStruct((B, L, D), q.dtype),
        grid=grid,
        in_specs=[q_spec, kv_spec, kv_spec,
                  pl.BlockSpec((Dh, D), lambda b, qi, h, ki: (h, 0))],
        out_specs=pl.BlockSpec((1, tq, D), lambda b, qi, h, ki: (b, qi, 0)),
        scratch_shapes=[pltpu.VMEM((tq, 1), jnp.float32),     # running max
                        pltpu.VMEM((tq, 1), jnp.float32),     # running denom
                        pltpu.VMEM((tq, Dh), jnp.float32),    # per-head acc
                        pltpu.VMEM((tq, D), jnp.float32)],    # wout accumulator
        compiler_params=pltpu.CompilerParams(
            dimension_semantics=("parallel", "parallel", "arbitrary", "arbitrary")),
    )(q, k, v, wout)


# ------------- fused residual-add + RMSNorm + gated MLP (up/gate/down) -------

def _norm_mlp_kernel(x_ref, res_ref, nw_ref, wu_ref, wg_ref, w2_ref,
                     y_ref, newres_ref, normed_sc, acc_sc, *, eps):
    j = pl.program_id(1)
    nj = pl.num_programs(1)

    @pl.when(j == 0)
    def _():
        total = x_ref[...].astype(jnp.float32) + res_ref[...].astype(jnp.float32)
        newres_ref[...] = total
        var = jnp.mean(total * total, axis=-1, keepdims=True)
        normed_sc[...] = total * jax.lax.rsqrt(var + eps) * nw_ref[...].astype(jnp.float32)
        acc_sc[...] = jnp.zeros_like(acc_sc)

    xn = normed_sc[...]
    up = jnp.dot(xn, wu_ref[...], preferred_element_type=jnp.float32)
    gate = jnp.dot(xn, wg_ref[...], preferred_element_type=jnp.float32)
    hidden = up * (gate * jax.nn.sigmoid(gate))            # up * silu(gate)
    acc_sc[...] += jnp.dot(hidden, w2_ref[...], preferred_element_type=jnp.float32)

    @pl.when(j == nj - 1)
    def _():
        y_ref[...] = acc_sc[...].astype(y_ref.dtype)


def fused_norm_mlp(x, residual, norm_w, w_up, w_gate, w2, *,
                   tm_target=256, tj_target=512):
    M, D = x.shape
    d_inter = w_up.shape[1]
    tm = _pick_tile(M, tm_target, 8)
    tj = _pick_tile(d_inter, tj_target, 128)
    grid = (M // tm, d_inter // tj)
    nw2d = norm_w.reshape(1, D)
    return pl.pallas_call(
        functools.partial(_norm_mlp_kernel, eps=EPS),
        out_shape=(jax.ShapeDtypeStruct((M, D), x.dtype),
                   jax.ShapeDtypeStruct((M, D), jnp.float32)),
        grid=grid,
        in_specs=[pl.BlockSpec((tm, D), lambda i, j: (i, 0)),
                  pl.BlockSpec((tm, D), lambda i, j: (i, 0)),
                  pl.BlockSpec((1, D), lambda i, j: (0, 0)),
                  pl.BlockSpec((D, tj), lambda i, j: (0, j)),
                  pl.BlockSpec((D, tj), lambda i, j: (0, j)),
                  pl.BlockSpec((tj, D), lambda i, j: (j, 0))],
        out_specs=(pl.BlockSpec((tm, D), lambda i, j: (i, 0)),
                   pl.BlockSpec((tm, D), lambda i, j: (i, 0))),
        scratch_shapes=[pltpu.VMEM((tm, D), jnp.float32),
                        pltpu.VMEM((tm, D), jnp.float32)],
        input_output_aliases={1: 1},
        compiler_params=pltpu.CompilerParams(
            dimension_semantics=("parallel", "arbitrary")),
    )(x, residual, nw2d, w_up, w_gate, w2)


# --------------------------- final add + RMSNorm -----------------------------

def _final_norm_kernel(x_ref, res_ref, nw_ref, y_ref, *, eps):
    total = x_ref[...].astype(jnp.float32) + res_ref[...].astype(jnp.float32)
    var = jnp.mean(total * total, axis=-1, keepdims=True)
    y_ref[...] = (total * jax.lax.rsqrt(var + eps)
                  * nw_ref[...].astype(jnp.float32)).astype(y_ref.dtype)


def final_add_rmsnorm(x, residual, norm_w, *, tm_target=512):
    M, D = x.shape
    tm = _pick_tile(M, tm_target, 8)
    return pl.pallas_call(
        functools.partial(_final_norm_kernel, eps=EPS),
        out_shape=jax.ShapeDtypeStruct((M, D), x.dtype),
        grid=(M // tm,),
        in_specs=[pl.BlockSpec((tm, D), lambda i: (i, 0)),
                  pl.BlockSpec((tm, D), lambda i: (i, 0)),
                  pl.BlockSpec((1, D), lambda i: (0, 0))],
        out_specs=pl.BlockSpec((tm, D), lambda i: (i, 0)),
        compiler_params=pltpu.CompilerParams(dimension_semantics=("parallel",)),
    )(x, residual, norm_w.reshape(1, D))


# ------------------------------ model assembly -------------------------------

def init_params(key, d_model, d_inter, arch_full):
    params = []
    for arch in arch_full:
        key, k0, k1, k2, k3, k4 = jax.random.split(key, 6)
        p = {
            "norm_w": jnp.ones((d_model,), jnp.float32),      # RMSNorm default init
            "wqkv": 0.02 * jax.random.normal(k0, (d_model, 3 * d_model), jnp.float32),
            "wout": 0.02 * jax.random.normal(k1, (d_model, d_model), jnp.float32),
        }
        if arch.isupper():     # 'T': attention + gated MLP sub-block
            p["norm2_w"] = jnp.ones((d_model,), jnp.float32)
            p["w_up"] = 0.02 * jax.random.normal(k2, (d_model, d_inter), jnp.float32)
            p["w_gate"] = 0.02 * jax.random.normal(k3, (d_model, d_inter), jnp.float32)
            p["w2"] = 0.02 * jax.random.normal(k4, (d_inter, d_model), jnp.float32)
        params.append(p)
    final_norm_w = jnp.ones((d_model,), jnp.float32)
    return params, final_norm_w


def isotropic_forward(params, final_norm_w, hidden_states, mask, *,
                      n_heads, arch_full):
    # mask is required in unpacked (B, L, D) mode, as in the PyTorch module;
    # TODO(synk): key-padding mask is validated but not applied (matches reference).
    assert mask is not None
    assert hidden_states.ndim == 3
    B, L, D = hidden_states.shape
    H = n_heads
    Dh = D // H
    residual = None
    h = hidden_states

    for p, arch in zip(params, arch_full):
        x2d = h.reshape(B * L, D)
        if arch.lower() == "t":
            # fused (residual add + RMSNorm + QKV projection)
            qkv, residual = fused_norm_matmul(x2d, residual, p["norm_w"], p["wqkv"])
            # head split: pure layout plumbing, fused by XLA inside the jit
            qkv5 = qkv.reshape(B, L, 3, H, Dh).transpose(2, 0, 3, 1, 4)  # (3,B,H,L,Dh)
            q, k, v = qkv5[0], qkv5[1], qkv5[2]
            # fused (causal flash attention + output projection) -> (B, L, D)
            h = flash_attention_wout(q, k, v, p["wout"])
        else:
            # TODO(synk): Mamba2 SSM mixer blocks ('m'/'M') not implemented in Pallas.
            raise NotImplementedError("only attention blocks ('t'/'T') are implemented")
        if arch.isupper():
            h2d, residual = fused_norm_mlp(h.reshape(B * L, D), residual,
                                           p["norm2_w"], p["w_up"], p["w_gate"], p["w2"])
            h = h2d.reshape(B, L, D)

    # final RMSNorm(hidden + residual), prenorm=False, residual_in_fp32=True
    assert residual is not None
    y = final_add_rmsnorm(h.reshape(B * L, D), residual, final_norm_w)
    return y.reshape(B, L, D)


# --------------------------- pure-JAX reference -------------------------------

def ref_forward(params, final_norm_w, hidden_states, *, n_heads, arch_full):
    B, L, D = hidden_states.shape
    Dh = D // n_heads

    def rms(tot, w):
        return tot * jax.lax.rsqrt(jnp.mean(tot * tot, -1, keepdims=True) + EPS) * w

    residual = jnp.zeros((B, L, D), jnp.float32)
    h = hidden_states
    for p, arch in zip(params, arch_full):
        residual = h.astype(jnp.float32) + residual
        normed = rms(residual, p["norm_w"])
        qkv = normed @ p["wqkv"]
        q, k, v = jnp.split(qkv, 3, axis=-1)
        q = q.reshape(B, L, n_heads, Dh).transpose(0, 2, 1, 3)
        k = k.reshape(B, L, n_heads, Dh).transpose(0, 2, 1, 3)
        v = v.reshape(B, L, n_heads, Dh).transpose(0, 2, 1, 3)
        s = jnp.einsum("bhqd,bhkd->bhqk", q, k) / math.sqrt(Dh)
        causal = jnp.tril(jnp.ones((L, L), bool))
        s = jnp.where(causal, s, -jnp.inf)
        pmat = jax.nn.softmax(s, axis=-1)
        o = jnp.einsum("bhqk,bhkd->bhqd", pmat, v)
        o = o.transpose(0, 2, 1, 3).reshape(B, L, D)
        h = o @ p["wout"]
        if arch.isupper():
            residual = h.astype(jnp.float32) + residual
            normed2 = rms(residual, p["norm2_w"])
            up = normed2 @ p["w_up"]
            gate = normed2 @ p["w_gate"]
            h = (up * jax.nn.silu(gate)) @ p["w2"]
    return rms(h.astype(jnp.float32) + residual, final_norm_w)


# ----------------------------------- main -------------------------------------

if __name__ == "__main__":
    B, L, D = 2, 8, 32
    n_heads, d_inter = 4, 64
    arch_full = ("t", "T")        # arch_layout "t1T1" for this stage

    key = jax.random.PRNGKey(0)
    kx, kp = jax.random.split(key)
    x = jax.random.normal(kx, (B, L, D), jnp.float32)
    mask = jnp.ones((B, L), dtype=bool)

    params, final_norm_w = init_params(kp, D, d_inter, arch_full)

    fwd = jax.jit(functools.partial(isotropic_forward,
                                    n_heads=n_heads, arch_full=arch_full))
    out = jax.block_until_ready(fwd(params, final_norm_w, x, mask))

    ref = ref_forward(params, final_norm_w, x,
                      n_heads=n_heads, arch_full=arch_full)

    assert out.shape == (B, L, D), out.shape
    assert bool(jnp.all(jnp.isfinite(out)))
    assert bool(jnp.allclose(out, ref, atol=2e-2, rtol=2e-2)), "mismatch vs JAX reference"
    print("KERNEL_OK")
</pallas_src>

<mosaic_0001>
module attributes {stable_mosaic.version = 11 : i64} {
  func.func @_norm_matmul_nores_kernel(%arg0: i32, %arg1: i32, %arg2: memref<16x32xf32, #tpu.memory_space<vmem>>, %arg3: memref<1x32xf32, #tpu.memory_space<vmem>>, %arg4: memref<32x96xf32, #tpu.memory_space<vmem>>, %arg5: memref<16x96xf32, #tpu.memory_space<vmem>>, %arg6: memref<16x32xf32, #tpu.memory_space<vmem>>, %arg7: memref<16x32xf32, #tpu.memory_space<vmem>>) attributes {dimension_semantics = [#tpu.dimension_semantics<parallel>, #tpu.dimension_semantics<arbitrary>], iteration_bounds = array<i64: 1, 1>, scalar_prefetch = 0 : i64, scratch_operands = 1 : i64, tpu.core_type = #tpu.core_type<tc>, window_params = [{transform_indices = @transform_0, window_bounds = array<i64: 16, 32>}, {pipeline_mode = #tpu.pipeline_mode<synchronous>, transform_indices = @transform_1, window_bounds = array<i64: 1, 32>}, {transform_indices = @transform_2, window_bounds = array<i64: 32, 96>}, {transform_indices = @transform_3, window_bounds = array<i64: 16, 96>}, {transform_indices = @transform_4, window_bounds = array<i64: 16, 32>}]} {
    %c0_i32 = arith.constant 0 : i32
    %0 = arith.cmpi eq, %arg1, %c0_i32 : i32
    %1 = arith.extui %0 : i1 to i32
    %c0_i32_0 = arith.constant 0 : i32
    %2 = arith.cmpi ne, %1, %c0_i32_0 : i32
    scf.if %2 {
      %c0_6 = arith.constant 0 : index
      %c0_7 = arith.constant 0 : index
      %7 = vector.load %arg2[%c0_6, %c0_7] : memref<16x32xf32, #tpu.memory_space<vmem>>, vector<16x32xf32>
      %c0_8 = arith.constant 0 : index
      %c0_9 = arith.constant 0 : index
      %8 = vector.load %arg6[%c0_8, %c0_9] : memref<16x32xf32, #tpu.memory_space<vmem>>, vector<16x32xf32>
      tpu.vector_store %arg6[%c0_8, %c0_9], %7 {strides = array<i32>} : memref<16x32xf32, #tpu.memory_space<vmem>>, vector<16x32xf32>,
      %9 = arith.mulf %7, %7 : vector<16x32xf32>
      %cst_10 = arith.constant dense<0.000000e+00> : vector<16xf32>
      %10 = vector.multi_reduction <add>, %9, %cst_10 [1] : vector<16x32xf32> to vector<16xf32>
      %11 = vector.shape_cast %10 : vector<16xf32> to vector<16x1xf32>
      %cst_11 = arith.constant 3.200000e+01 : f32
      %12 = vector.broadcast %cst_11 : f32 to vector<16x1xf32>
      %13 = arith.divf %11, %12 : vector<16x1xf32>
      %cst_12 = arith.constant 9.99999974E-6 : f32
      %14 = vector.broadcast %cst_12 : f32 to vector<16x1xf32>
      %15 = arith.addf %13, %14 : vector<16x1xf32>
      %16 = math.rsqrt %15 : vector<16x1xf32>
      %17 = vector.broadcast %16 : vector<16x1xf32> to vector<16x32xf32>
      %18 = arith.mulf %7, %17 : vector<16x32xf32>
      %c0_13 = arith.constant 0 : index
      %c0_14 = arith.constant 0 : index
      %19 = vector.load %arg3[%c0_13, %c0_14] : memref<1x32xf32, #tpu.memory_space<vmem>>, vector<1x32xf32>
      %20 = vector.broadcast %19 : vector<1x32xf32> to vector<16x32xf32>
      %21 = arith.mulf %18, %20 : vector<16x32xf32>
      %c0_15 = arith.constant 0 : index
      %c0_16 = arith.constant 0 : index
      %22 = vector.load %arg7[%c0_15, %c0_16] : memref<16x32xf32, #tpu.memory_space<vmem>>, vector<16x32xf32>
      tpu.vector_store %arg7[%c0_15, %c0_16], %21 {strides = array<i32>} : memref<16x32xf32, #tpu.memory_space<vmem>>, vector<16x32xf32>,
    } else {
    }
    %c0 = arith.constant 0 : index
    %c0_1 = arith.constant 0 : index
    %3 = vector.load %arg7[%c0, %c0_1] : memref<16x32xf32, #tpu.memory_space<vmem>>, vector<16x32xf32>
    %c0_2 = arith.constant 0 : index
    %c0_3 = arith.constant 0 : index
    %4 = vector.load %arg4[%c0_2, %c0_3] : memref<32x96xf32, #tpu.memory_space<vmem>>, vector<32x96xf32>
    %cst = arith.constant dense<0.000000e+00> : vector<16x96xf32>
    %5 = tpu.matmul %3, %4, %cst {dimension_numbers = #tpu.dot_dimension_numbers<[1], [0], [0], [1], [0, 0, 1, 1], [], []>} : vector<16x32xf32>, vector<32x96xf32>, vector<16x96xf32> -> vector<16x96xf32>
    %c0_4 = arith.constant 0 : index
    %c0_5 = arith.constant 0 : index
    %6 = vector.load %arg5[%c0_4, %c0_5] : memref<16x96xf32, #tpu.memory_space<vmem>>, vector<16x96xf32>
    tpu.vector_store %arg5[%c0_4, %c0_5], %5 {strides = array<i32>} : memref<16x96xf32, #tpu.memory_space<vmem>>, vector<16x96xf32>,
    return
  }
  func.func @transform_0(%arg0: i32, %arg1: i32) -> (i32, i32) {
    %c0_i32 = arith.constant 0 : i32
    %c0_i32_0 = arith.constant 0 : i32
    return %arg0, %c0_i32 : i32, i32
  }
  func.func @transform_1(%arg0: i32, %arg1: i32) -> (i32, i32) {
    %c0_i32 = arith.constant 0 : i32
    %c0_i32_0 = arith.constant 0 : i32
    %c0_i32_1 = arith.constant 0 : i32
    return %c0_i32, %c0_i32_0 : i32, i32
  }
  func.func @transform_2(%arg0: i32, %arg1: i32) -> (i32, i32) {
    %c0_i32 = arith.constant 0 : i32
    %c0_i32_0 = arith.constant 0 : i32
    return %c0_i32, %arg1 : i32, i32
  }
  func.func @transform_3(%arg0: i32, %arg1: i32) -> (i32, i32) {
    %c0_i32 = arith.constant 0 : i32
    return %arg0, %arg1 : i32, i32
  }
  func.func @transform_4(%arg0: i32, %arg1: i32) -> (i32, i32) {
    %c0_i32 = arith.constant 0 : i32
    %c0_i32_0 = arith.constant 0 : i32
    return %arg0, %c0_i32 : i32, i32
  }
}

module attributes {stable_mosaic.version = 11 : i64} {
  func.func @_flash_attn_wout_kernel(%arg0: i32, %arg1: i32, %arg2: i32, %arg3: i32, %arg4: memref<1x1x8x8xf32, #tpu.memory_space<vmem>>, %arg5: memref<1x1x8x8xf32, #tpu.memory_space<vmem>>, %arg6: memref<1x1x8x8xf32, #tpu.memory_space<vmem>>, %arg7: memref<8x32xf32, #tpu.memory_space<vmem>>, %arg8: memref<1x8x32xf32, #tpu.memory_space<vmem>>, %arg9: memref<8x1xf32, #tpu.memory_space<vmem>>, %arg10: memref<8x1xf32, #tpu.memory_space<vmem>>, %arg11: memref<8x8xf32, #tpu.memory_space<vmem>>, %arg12: memref<8x32xf32, #tpu.memory_space<vmem>>) attributes {dimension_semantics = [#tpu.dimension_semantics<parallel>, #tpu.dimension_semantics<parallel>, #tpu.dimension_semantics<arbitrary>, #tpu.dimension_semantics<arbitrary>], iteration_bounds = array<i64: 2, 1, 4, 1>, scalar_prefetch = 0 : i64, scratch_operands = 4 : i64, tpu.core_type = #tpu.core_type<tc>, window_params = [{transform_indices = @transform_0, window_bounds = array<i64: 1, 1, 8, 8>}, {transform_indices = @transform_1, window_bounds = array<i64: 1, 1, 8, 8>}, {transform_indices = @transform_2, window_bounds = array<i64: 1, 1, 8, 8>}, {transform_indices = @transform_3, window_bounds = array<i64: 8, 32>}, {transform_indices = @transform_4, window_bounds = array<i64: 1, 8, 32>}]} {
    %c0_i32 = arith.constant 0 : i32
    %0 = arith.cmpi eq, %arg3, %c0_i32 : i32
    %1 = arith.extui %0 : i1 to i32
    %c0_i32_0 = arith.constant 0 : i32
    %2 = arith.cmpi ne, %1, %c0_i32_0 : i32
    scf.if %2 {
      %cst = arith.constant -1.000000e+30 : f32
      %22 = vector.broadcast %cst : f32 to vector<8x1xf32>
      %c0 = arith.constant 0 : index
      %c0_10 = arith.constant 0 : index
      %23 = vector.load %arg9[%c0, %c0_10] : memref<8x1xf32, #tpu.memory_space<vmem>>, vector<8x1xf32>
      tpu.vector_store %arg9[%c0, %c0_10], %22 {strides = array<i32>} : memref<8x1xf32, #tpu.memory_space<vmem>>, vector<8x1xf32>,
      %cst_11 = arith.constant 0.000000e+00 : f32
      %24 = vector.broadcast %cst_11 : f32 to vector<8x1xf32>
      %c0_12 = arith.constant 0 : index
      %c0_13 = arith.constant 0 : index
      %25 = vector.load %arg10[%c0_12, %c0_13] : memref<8x1xf32, #tpu.memory_space<vmem>>, vector<8x1xf32>
      tpu.vector_store %arg10[%c0_12, %c0_13], %24 {strides = array<i32>} : memref<8x1xf32, #tpu.memory_space<vmem>>, vector<8x1xf32>,
      %cst_14 = arith.constant 0.000000e+00 : f32
      %26 = vector.broadcast %cst_14 : f32 to vector<8x8xf32>
      %c0_15 = arith.constant 0 : index
      %c0_16 = arith.constant 0 : index
      %27 = vector.load %arg11[%c0_15, %c0_16] : memref<8x8xf32, #tpu.memory_space<vmem>>, vector<8x8xf32>
      tpu.vector_store %arg11[%c0_15, %c0_16], %26 {strides = array<i32>} : memref<8x8xf32, #tpu.memory_space<vmem>>, vector<8x8xf32>,
    } else {
    }
    %c0_i32_1 = arith.constant 0 : i32
    %3 = arith.cmpi eq, %arg3, %c0_i32_1 : i32
    %c0_i32_2 = arith.constant 0 : i32
    %4 = arith.cmpi eq, %arg2, %c0_i32_2 : i32
    %5 = arith.andi %3, %4 : i1
    %6 = arith.extui %5 : i1 to i32
    %c0_i32_3 = arith.constant 0 : i32
    %7 = arith.cmpi ne, %6, %c0_i32_3 : i32
    scf.if %7 {
      %cst = arith.constant 0.000000e+00 : f32
      %22 = vector.broadcast %cst : f32 to vector<8x32xf32>
      %c0 = arith.constant 0 : index
      %c0_10 = arith.constant 0 : index
      %23 = vector.load %arg12[%c0, %c0_10] : memref<8x32xf32, #tpu.memory_space<vmem>>, vector<8x32xf32>
      tpu.vector_store %arg12[%c0, %c0_10], %22 {strides = array<i32>} : memref<8x32xf32, #tpu.memory_space<vmem>>, vector<8x32xf32>,
    } else {
    }
    %c8_i32 = arith.constant 8 : i32
    %8 = arith.muli %arg3, %c8_i32 : i32
    %c8_i32_4 = arith.constant 8 : i32
    %9 = arith.muli %arg1, %c8_i32_4 : i32
    %c7_i32 = arith.constant 7 : i32
    %10 = arith.addi %9, %c7_i32 : i32
    %11 = arith.cmpi sle, %8, %10 : i32
    %12 = arith.extui %11 : i1 to i32
    %c0_i32_5 = arith.constant 0 : i32
    %13 = arith.cmpi ne, %12, %c0_i32_5 : i32
    scf.if %13 {
      %c0 = arith.constant 0 : index
      %c0_10 = arith.constant 0 : index
      %c0_11 = arith.constant 0 : index
      %c0_12 = arith.constant 0 : index
      %22 = vector.load %arg4[%c0, %c0_10, %c0_11, %c0_12] : memref<1x1x8x8xf32, #tpu.memory_space<vmem>>, vector<1x1x8x8xf32>
      %23 = vector.shape_cast %22 : vector<1x1x8x8xf32> to vector<8x8xf32>
      %cst = arith.constant 0.353553385 : f32
      %24 = vector.broadcast %cst : f32 to vector<8x8xf32>
      %25 = arith.mulf %23, %24 : vector<8x8xf32>
      %c0_13 = arith.constant 0 : index
      %c0_14 = arith.constant 0 : index
      %c0_15 = arith.constant 0 : index
      %c0_16 = arith.constant 0 : index
      %26 = vector.load %arg5[%c0_13, %c0_14, %c0_15, %c0_16] : memref<1x1x8x8xf32, #tpu.memory_space<vmem>>, vector<1x1x8x8xf32>
      %27 = vector.shape_cast %26 : vector<1x1x8x8xf32> to vector<8x8xf32>
      %c0_17 = arith.constant 0 : index
      %c0_18 = arith.constant 0 : index
      %c0_19 = arith.constant 0 : index
      %c0_20 = arith.constant 0 : index
      %28 = vector.load %arg6[%c0_17, %c0_18, %c0_19, %c0_20] : memref<1x1x8x8xf32, #tpu.memory_space<vmem>>, vector<1x1x8x8xf32>
      %29 = vector.shape_cast %28 : vector<1x1x8x8xf32> to vector<8x8xf32>
      %cst_21 = arith.constant dense<0.000000e+00> : vector<8x8xf32>
      %30 = tpu.matmul %25, %27, %cst_21 {dimension_numbers = #tpu.dot_dimension_numbers<[1], [1], [0], [0], [0, 0, 1, 0], [], []>} : vector<8x8xf32>, vector<8x8xf32>, vector<8x8xf32> -> vector<8x8xf32>
      %c8_i32_22 = arith.constant 8 : i32
      %31 = arith.muli %arg1, %c8_i32_22 : i32
      %32 = tpu.iota {dimensions = array<i32: 0>} : vector<8x8xi32>
      %33 = vector.broadcast %31 : i32 to vector<8x8xi32>
      %34 = arith.addi %33, %32 : vector<8x8xi32>
      %c8_i32_23 = arith.constant 8 : i32
      %35 = arith.muli %arg3, %c8_i32_23 : i32
      %36 = tpu.iota {dimensions = array<i32: 1>} : vector<8x8xi32>
      %37 = vector.broadcast %35 : i32 to vector<8x8xi32>
      %38 = arith.addi %37, %36 : vector<8x8xi32>
      %39 = arith.cmpi sle, %38, %34 : vector<8x8xi32>
      %cst_24 = arith.constant -1.000000e+30 : f32
      %40 = vector.broadcast %cst_24 : f32 to vector<8x8xf32>
      %41 = arith.select %39, %30, %40 : vector<8x8xi1>, vector<8x8xf32>
      %c0_25 = arith.constant 0 : index
      %c0_26 = arith.constant 0 : index
      %42 = vector.load %arg9[%c0_25, %c0_26] : memref<8x1xf32, #tpu.memory_space<vmem>>, vector<8x1xf32>
      %cst_27 = arith.constant dense<0xFF800000> : vector<8xf32>
      %43 = vector.multi_reduction <maximumf>, %41, %cst_27 [1] : vector<8x8xf32> to vector<8xf32>
      %44 = vector.shape_cast %43 : vector<8xf32> to vector<8x1xf32>
      %45 = arith.maximumf %42, %44 : vector<8x1xf32>
      %c0_28 = arith.constant 0 : index
      %c0_29 = arith.constant 0 : index
      %46 = vector.load %arg9[%c0_28, %c0_29] : memref<8x1xf32, #tpu.memory_space<vmem>>, vector<8x1xf32>
      %47 = arith.subf %46, %45 : vector<8x1xf32>
      %48 = math.exp %47 : vector<8x1xf32>
      %49 = vector.broadcast %45 : vector<8x1xf32> to vector<8x8xf32>
      %50 = arith.subf %41, %49 : vector<8x8xf32>
      %51 = math.exp %50 : vector<8x8xf32>
      %c0_30 = arith.constant 0 : index
      %c0_31 = arith.constant 0 : index
      %52 = vector.load %arg10[%c0_30, %c0_31] : memref<8x1xf32, #tpu.memory_space<vmem>>, vector<8x1xf32>
      %53 = arith.mulf %48, %52 : vector<8x1xf32>
      %cst_32 = arith.constant dense<0.000000e+00> : vector<8xf32>
      %54 = vector.multi_reduction <add>, %51, %cst_32 [1] : vector<8x8xf32> to vector<8xf32>
      %55 = vector.shape_cast %54 : vector<8xf32> to vector<8x1xf32>
      %56 = arith.addf %53, %55 : vector<8x1xf32>
      %c0_33 = arith.constant 0 : index
      %c0_34 = arith.constant 0 : index
      %57 = vector.load %arg10[%c0_33, %c0_34] : memref<8x1xf32, #tpu.memory_space<vmem>>, vector<8x1xf32>
      tpu.vector_store %arg10[%c0_33, %c0_34], %56 {strides = array<i32>} : memref<8x1xf32, #tpu.memory_space<vmem>>, vector<8x1xf32>,
      %c0_35 = arith.constant 0 : index
      %c0_36 = arith.constant 0 : index
      %58 = vector.load %arg11[%c0_35, %c0_36] : memref<8x8xf32, #tpu.memory_space<vmem>>, vector<8x8xf32>
      %59 = vector.broadcast %48 : vector<8x1xf32> to vector<8x8xf32>
      %60 = arith.mulf %59, %58 : vector<8x8xf32>
      %cst_37 = arith.constant dense<0.000000e+00> : vector<8x8xf32>
      %61 = tpu.matmul %51, %29, %cst_37 {dimension_numbers = #tpu.dot_dimension_numbers<[1], [0], [0], [1], [0, 0, 1, 1], [], []>} : vector<8x8xf32>, vector<8x8xf32>, vector<8x8xf32> -> vector<8x8xf32>
      %62 = arith.addf %60, %61 : vector<8x8xf32>
      %c0_38 = arith.constant 0 : index
      %c0_39 = arith.constant 0 : index
      %63 = vector.load %arg11[%c0_38, %c0_39] : memref<8x8xf32, #tpu.memory_space<vmem>>, vector<8x8xf32>
      tpu.vector_store %arg11[%c0_38, %c0_39], %62 {strides = array<i32>} : memref<8x8xf32, #tpu.memory_space<vmem>>, vector<8x8xf32>,
      %c0_40 = arith.constant 0 : index
      %c0_41 = arith.constant 0 : index
      %64 = vector.load %arg9[%c0_40, %c0_41] : memref<8x1xf32, #tpu.memory_space<vmem>>, vector<8x1xf32>
      tpu.vector_store %arg9[%c0_40, %c0_41], %45 {strides = array<i32>} : memref<8x1xf32, #tpu.memory_space<vmem>>, vector<8x1xf32>,
    } else {
    }
    %c0_i32_6 = arith.constant 0 : i32
    %14 = arith.cmpi eq, %arg3, %c0_i32_6 : i32
    %15 = arith.extui %14 : i1 to i32
    %c0_i32_7 = arith.constant 0 : i32
    %16 = arith.cmpi ne, %15, %c0_i32_7 : i32
    scf.if %16 {
      %c0 = arith.constant 0 : index
      %c0_10 = arith.constant 0 : index
      %22 = vector.load %arg11[%c0, %c0_10] : memref<8x8xf32, #tpu.memory_space<vmem>>, vector<8x8xf32>
      %c0_11 = arith.constant 0 : index
      %c0_12 = arith.constant 0 : index
      %23 = vector.load %arg10[%c0_11, %c0_12] : memref<8x1xf32, #tpu.memory_space<vmem>>, vector<8x1xf32>
      %24 = tpu.reciprocal %23 {approx = true} : vector<8x1xf32> -> vector<8x1xf32>
      %25 = vector.broadcast %24 : vector<8x1xf32> to vector<8x8xf32>
      %26 = arith.mulf %22, %25 : vector<8x8xf32>
      %c0_13 = arith.constant 0 : index
      %c0_14 = arith.constant 0 : index
      %27 = vector.load %arg12[%c0_13, %c0_14] : memref<8x32xf32, #tpu.memory_space<vmem>>, vector<8x32xf32>
      %c0_15 = arith.constant 0 : index
      %c0_16 = arith.constant 0 : index
      %28 = vector.load %arg7[%c0_15, %c0_16] : memref<8x32xf32, #tpu.memory_space<vmem>>, vector<8x32xf32>
      %cst = arith.constant dense<0.000000e+00> : vector<8x32xf32>
      %29 = tpu.matmul %26, %28, %cst {dimension_numbers = #tpu.dot_dimension_numbers<[1], [0], [0], [1], [0, 0, 1, 1], [], []>} : vector<8x8xf32>, vector<8x32xf32>, vector<8x32xf32> -> vector<8x32xf32>
      %30 = arith.addf %27, %29 : vector<8x32xf32>
      %c0_17 = arith.constant 0 : index
      %c0_18 = arith.constant 0 : index
      %31 = vector.load %arg12[%c0_17, %c0_18] : memref<8x32xf32, #tpu.memory_space<vmem>>, vector<8x32xf32>
      tpu.vector_store %arg12[%c0_17, %c0_18], %30 {strides = array<i32>} : memref<8x32xf32, #tpu.memory_space<vmem>>, vector<8x32xf32>,
    } else {
    }
    %c0_i32_8 = arith.constant 0 : i32
    %17 = arith.cmpi eq, %arg3, %c0_i32_8 : i32
    %c3_i32 = arith.constant 3 : i32
    %18 = arith.cmpi eq, %arg2, %c3_i32 : i32
    %19 = arith.andi %17, %18 : i1
    %20 = arith.extui %19 : i1 to i32
    %c0_i32_9 = arith.constant 0 : i32
    %21 = arith.cmpi ne, %20, %c0_i32_9 : i32
    scf.if %21 {
      %c0 = arith.constant 0 : index
      %c0_10 = arith.constant 0 : index
      %22 = vector.load %arg12[%c0, %c0_10] : memref<8x32xf32, #tpu.memory_space<vmem>>, vector<8x32xf32>
      %c0_11 = arith.constant 0 : index
      %c0_12 = arith.constant 0 : index
      %c0_13 = arith.constant 0 : index
      %23 = vector.load %arg8[%c0_11, %c0_12, %c0_13] : memref<1x8x32xf32, #tpu.memory_space<vmem>>, vector<1x8x32xf32>
      %24 = vector.shape_cast %23 : vector<1x8x32xf32> to vector<8x32xf32>
      %25 = vector.shape_cast %22 : vector<8x32xf32> to vector<1x8x32xf32>
      tpu.vector_store %arg8[%c0_11, %c0_12, %c0_13], %25 {strides = array<i32>} : memref<1x8x32xf32, #tpu.memory_space<vmem>>, vector<1x8x32xf32>,
    } else {
    }
    return
  }
  func.func @transform_0(%arg0: i32, %arg1: i32, %arg2: i32, %arg3: i32) -> (i32, i32, i32, i32) {
    %c0_i32 = arith.constant 0 : i32
    %c0_i32_0 = arith.constant 0 : i32
    return %arg0, %arg2, %arg1, %c0_i32 : i32, i32, i32, i32
  }
  func.func @transform_1(%arg0: i32, %arg1: i32, %arg2: i32, %arg3: i32) -> (i32, i32, i32, i32) {
    %c0_i32 = arith.constant 0 : i32
    %c0_i32_0 = arith.constant 0 : i32
    return %arg0, %arg2, %arg3, %c0_i32 : i32, i32, i32, i32
  }
  func.func @transform_2(%arg0: i32, %arg1: i32, %arg2: i32, %arg3: i32) -> (i32, i32, i32, i32) {
    %c0_i32 = arith.constant 0 : i32
    %c0_i32_0 = arith.constant 0 : i32
    return %arg0, %arg2, %arg3, %c0_i32 : i32, i32, i32, i32
  }
  func.func @transform_3(%arg0: i32, %arg1: i32, %arg2: i32, %arg3: i32) -> (i32, i32) {
    %c0_i32 = arith.constant 0 : i32
    %c0_i32_0 = arith.constant 0 : i32
    return %arg2, %c0_i32 : i32, i32
  }
  func.func @transform_4(%arg0: i32, %arg1: i32, %arg2: i32, %arg3: i32) -> (i32, i32, i32) {
    %c0_i32 = arith.constant 0 : i32
    %c0_i32_0 = arith.constant 0 : i32
    return %arg0, %arg1, %c0_i32 : i32, i32, i32
  }
}

module attributes {stable_mosaic.version = 11 : i64} {
  func.func @_norm_mlp_kernel(%arg0: i32, %arg1: i32, %arg2: memref<16x32xf32, #tpu.memory_space<vmem>>, %arg3: memref<16x32xf32, #tpu.memory_space<vmem>>, %arg4: memref<1x32xf32, #tpu.memory_space<vmem>>, %arg5: memref<32x64xf32, #tpu.memory_space<vmem>>, %arg6: memref<32x64xf32, #tpu.memory_space<vmem>>, %arg7: memref<64x32xf32, #tpu.memory_space<vmem>>, %arg8: memref<16x32xf32, #tpu.memory_space<vmem>>, %arg9: memref<16x32xf32, #tpu.memory_space<vmem>>, %arg10: memref<16x32xf32, #tpu.memory_space<vmem>>, %arg11: memref<16x32xf32, #tpu.memory_space<vmem>>) attributes {dimension_semantics = [#tpu.dimension_semantics<parallel>, #tpu.dimension_semantics<arbitrary>], iteration_bounds = array<i64: 1, 1>, scalar_prefetch = 0 : i64, scratch_operands = 2 : i64, tpu.core_type = #tpu.core_type<tc>, window_params = [{transform_indices = @transform_0, window_bounds = array<i64: 16, 32>}, {transform_indices = @transform_1, window_bounds = array<i64: 16, 32>}, {pipeline_mode = #tpu.pipeline_mode<synchronous>, transform_indices = @transform_2, window_bounds = array<i64: 1, 32>}, {transform_indices = @transform_3, window_bounds = array<i64: 32, 64>}, {transform_indices = @transform_4, window_bounds = array<i64: 32, 64>}, {transform_indices = @transform_5, window_bounds = array<i64: 64, 32>}, {transform_indices = @transform_6, window_bounds = array<i64: 16, 32>}, {transform_indices = @transform_7, window_bounds = array<i64: 16, 32>}]} {
    %c0_i32 = arith.constant 0 : i32
    %0 = arith.cmpi eq, %arg1, %c0_i32 : i32
    %1 = arith.extui %0 : i1 to i32
    %c0_i32_0 = arith.constant 0 : i32
    %2 = arith.cmpi ne, %1, %c0_i32_0 : i32
    scf.if %2 {
      %c0_17 = arith.constant 0 : index
      %c0_18 = arith.constant 0 : index
      %23 = vector.load %arg2[%c0_17, %c0_18] : memref<16x32xf32, #tpu.memory_space<vmem>>, vector<16x32xf32>
      %c0_19 = arith.constant 0 : index
      %c0_20 = arith.constant 0 : index
      %24 = vector.load %arg3[%c0_19, %c0_20] : memref<16x32xf32, #tpu.memory_space<vmem>>, vector<16x32xf32>
      %25 = arith.addf %23, %24 : vector<16x32xf32>
      %c0_21 = arith.constant 0 : index
      %c0_22 = arith.constant 0 : index
      %26 = vector.load %arg9[%c0_21, %c0_22] : memref<16x32xf32, #tpu.memory_space<vmem>>, vector<16x32xf32>
      tpu.vector_store %arg9[%c0_21, %c0_22], %25 {strides = array<i32>} : memref<16x32xf32, #tpu.memory_space<vmem>>, vector<16x32xf32>,
      %27 = arith.mulf %25, %25 : vector<16x32xf32>
      %cst_23 = arith.constant dense<0.000000e+00> : vector<16xf32>
      %28 = vector.multi_reduction <add>, %27, %cst_23 [1] : vector<16x32xf32> to vector<16xf32>
      %29 = vector.shape_cast %28 : vector<16xf32> to vector<16x1xf32>
      %cst_24 = arith.constant 3.200000e+01 : f32
      %30 = vector.broadcast %cst_24 : f32 to vector<16x1xf32>
      %31 = arith.divf %29, %30 : vector<16x1xf32>
      %cst_25 = arith.constant 9.99999974E-6 : f32
      %32 = vector.broadcast %cst_25 : f32 to vector<16x1xf32>
      %33 = arith.addf %31, %32 : vector<16x1xf32>
      %34 = math.rsqrt %33 : vector<16x1xf32>
      %35 = vector.broadcast %34 : vector<16x1xf32> to vector<16x32xf32>
      %36 = arith.mulf %25, %35 : vector<16x32xf32>
      %c0_26 = arith.constant 0 : index
      %c0_27 = arith.constant 0 : index
      %37 = vector.load %arg4[%c0_26, %c0_27] : memref<1x32xf32, #tpu.memory_space<vmem>>, vector<1x32xf32>
      %38 = vector.broadcast %37 : vector<1x32xf32> to vector<16x32xf32>
      %39 = arith.mulf %36, %38 : vector<16x32xf32>
      %c0_28 = arith.constant 0 : index
      %c0_29 = arith.constant 0 : index
      %40 = vector.load %arg10[%c0_28, %c0_29] : memref<16x32xf32, #tpu.memory_space<vmem>>, vector<16x32xf32>
      tpu.vector_store %arg10[%c0_28, %c0_29], %39 {strides = array<i32>} : memref<16x32xf32, #tpu.memory_space<vmem>>, vector<16x32xf32>,
      %cst_30 = arith.constant 0.000000e+00 : f32
      %41 = vector.broadcast %cst_30 : f32 to vector<16x32xf32>
      %c0_31 = arith.constant 0 : index
      %c0_32 = arith.constant 0 : index
      %42 = vector.load %arg11[%c0_31, %c0_32] : memref<16x32xf32, #tpu.memory_space<vmem>>, vector<16x32xf32>
      tpu.vector_store %arg11[%c0_31, %c0_32], %41 {strides = array<i32>} : memref<16x32xf32, #tpu.memory_space<vmem>>, vector<16x32xf32>,
    } else {
    }
    %c0 = arith.constant 0 : index
    %c0_1 = arith.constant 0 : index
    %3 = vector.load %arg10[%c0, %c0_1] : memref<16x32xf32, #tpu.memory_space<vmem>>, vector<16x32xf32>
    %c0_2 = arith.constant 0 : index
    %c0_3 = arith.constant 0 : index
    %4 = vector.load %arg5[%c0_2, %c0_3] : memref<32x64xf32, #tpu.memory_space<vmem>>, vector<32x64xf32>
    %cst = arith.constant dense<0.000000e+00> : vector<16x64xf32>
    %5 = tpu.matmul %3, %4, %cst {dimension_numbers = #tpu.dot_dimension_numbers<[1], [0], [0], [1], [0, 0, 1, 1], [], []>} : vector<16x32xf32>, vector<32x64xf32>, vector<16x64xf32> -> vector<16x64xf32>
    %c0_4 = arith.constant 0 : index
    %c0_5 = arith.constant 0 : index
    %6 = vector.load %arg6[%c0_4, %c0_5] : memref<32x64xf32, #tpu.memory_space<vmem>>, vector<32x64xf32>
    %cst_6 = arith.constant dense<0.000000e+00> : vector<16x64xf32>
    %7 = tpu.matmul %3, %6, %cst_6 {dimension_numbers = #tpu.dot_dimension_numbers<[1], [0], [0], [1], [0, 0, 1, 1], [], []>} : vector<16x32xf32>, vector<32x64xf32>, vector<16x64xf32> -> vector<16x64xf32>
    %8 = arith.negf %7 : vector<16x64xf32>
    %9 = math.exp %8 : vector<16x64xf32>
    %cst_7 = arith.constant 1.000000e+00 : f32
    %10 = vector.broadcast %cst_7 : f32 to vector<16x64xf32>
    %11 = arith.addf %10, %9 : vector<16x64xf32>
    %12 = arith.divf %10, %11 : vector<16x64xf32>
    %13 = arith.mulf %7, %12 : vector<16x64xf32>
    %14 = arith.mulf %5, %13 : vector<16x64xf32>
    %c0_8 = arith.constant 0 : index
    %c0_9 = arith.constant 0 : index
    %15 = vector.load %arg11[%c0_8, %c0_9] : memref<16x32xf32, #tpu.memory_space<vmem>>, vector<16x32xf32>
    %c0_10 = arith.constant 0 : index
    %c0_11 = arith.constant 0 : index
    %16 = vector.load %arg7[%c0_10, %c0_11] : memref<64x32xf32, #tpu.memory_space<vmem>>, vector<64x32xf32>
    %cst_12 = arith.constant dense<0.000000e+00> : vector<16x32xf32>
    %17 = tpu.matmul %14, %16, %cst_12 {dimension_numbers = #tpu.dot_dimension_numbers<[1], [0], [0], [1], [0, 0, 1, 1], [], []>} : vector<16x64xf32>, vector<64x32xf32>, vector<16x32xf32> -> vector<16x32xf32>
    %18 = arith.addf %15, %17 : vector<16x32xf32>
    %c0_13 = arith.constant 0 : index
    %c0_14 = arith.constant 0 : index
    %19 = vector.load %arg11[%c0_13, %c0_14] : memref<16x32xf32, #tpu.memory_space<vmem>>, vector<16x32xf32>
    tpu.vector_store %arg11[%c0_13, %c0_14], %18 {strides = array<i32>} : memref<16x32xf32, #tpu.memory_space<vmem>>, vector<16x32xf32>,
    %c0_i32_15 = arith.constant 0 : i32
    %20 = arith.cmpi eq, %arg1, %c0_i32_15 : i32
    %21 = arith.extui %20 : i1 to i32
    %c0_i32_16 = arith.constant 0 : i32
    %22 = arith.cmpi ne, %21, %c0_i32_16 : i32
    scf.if %22 {
      %c0_17 = arith.constant 0 : index
      %c0_18 = arith.constant 0 : index
      %23 = vector.load %arg11[%c0_17, %c0_18] : memref<16x32xf32, #tpu.memory_space<vmem>>, vector<16x32xf32>
      %c0_19 = arith.constant 0 : index
      %c0_20 = arith.constant 0 : index
      %24 = vector.load %arg8[%c0_19, %c0_20] : memref<16x32xf32, #tpu.memory_space<vmem>>, vector<16x32xf32>
      tpu.vector_store %arg8[%c0_19, %c0_20], %23 {strides = array<i32>} : memref<16x32xf32, #tpu.memory_space<vmem>>, vector<16x32xf32>,
    } else {
    }
    return
  }
  func.func @transform_0(%arg0: i32, %arg1: i32) -> (i32, i32) {
    %c0_i32 = arith.constant 0 : i32
    %c0_i32_0 = arith.constant 0 : i32
    return %arg0, %c0_i32 : i32, i32
  }
  func.func @transform_1(%arg0: i32, %arg1: i32) -> (i32, i32) {
    %c0_i32 = arith.constant 0 : i32
    %c0_i32_0 = arith.constant 0 : i32
    return %arg0, %c0_i32 : i32, i32
  }
  func.func @transform_2(%arg0: i32, %arg1: i32) -> (i32, i32) {
    %c0_i32 = arith.constant 0 : i32
    %c0_i32_0 = arith.constant 0 : i32
    %c0_i32_1 = arith.constant 0 : i32
    return %c0_i32, %c0_i32_0 : i32, i32
  }
  func.func @transform_3(%arg0: i32, %arg1: i32) -> (i32, i32) {
    %c0_i32 = arith.constant 0 : i32
    %c0_i32_0 = arith.constant 0 : i32
    return %c0_i32, %arg1 : i32, i32
  }
  func.func @transform_4(%arg0: i32, %arg1: i32) -> (i32, i32) {
    %c0_i32 = arith.constant 0 : i32
    %c0_i32_0 = arith.constant 0 : i32
    return %c0_i32, %arg1 : i32, i32
  }
  func.func @transform_5(%arg0: i32, %arg1: i32) -> (i32, i32) {
    %c0_i32 = arith.constant 0 : i32
    %c0_i32_0 = arith.constant 0 : i32
    return %arg1, %c0_i32 : i32, i32
  }
  func.func @transform_6(%arg0: i32, %arg1: i32) -> (i32, i32) {
    %c0_i32 = arith.constant 0 : i32
    %c0_i32_0 = arith.constant 0 : i32
    return %arg0, %c0_i32 : i32, i32
  }
  func.func @transform_7(%arg0: i32, %arg1: i32) -> (i32, i32) {
    %c0_i32 = arith.constant 0 : i32
    %c0_i32_0 = arith.constant 0 : i32
    return %arg0, %c0_i32 : i32, i32
  }
}

module attributes {stable_mosaic.version = 11 : i64} {
  func.func @_norm_matmul_kernel(%arg0: i32, %arg1: i32, %arg2: memref<16x32xf32, #tpu.memory_space<vmem>>, %arg3: memref<16x32xf32, #tpu.memory_space<vmem>>, %arg4: memref<1x32xf32, #tpu.memory_space<vmem>>, %arg5: memref<32x96xf32, #tpu.memory_space<vmem>>, %arg6: memref<16x96xf32, #tpu.memory_space<vmem>>, %arg7: memref<16x32xf32, #tpu.memory_space<vmem>>, %arg8: memref<16x32xf32, #tpu.memory_space<vmem>>) attributes {dimension_semantics = [#tpu.dimension_semantics<parallel>, #tpu.dimension_semantics<arbitrary>], iteration_bounds = array<i64: 1, 1>, scalar_prefetch = 0 : i64, scratch_operands = 1 : i64, tpu.core_type = #tpu.core_type<tc>, window_params = [{transform_indices = @transform_0, window_bounds = array<i64: 16, 32>}, {transform_indices = @transform_1, window_bounds = array<i64: 16, 32>}, {pipeline_mode = #tpu.pipeline_mode<synchronous>, transform_indices = @transform_2, window_bounds = array<i64: 1, 32>}, {transform_indices = @transform_3, window_bounds = array<i64: 32, 96>}, {transform_indices = @transform_4, window_bounds = array<i64: 16, 96>}, {transform_indices = @transform_5, window_bounds = array<i64: 16, 32>}]} {
    %c0_i32 = arith.constant 0 : i32
    %0 = arith.cmpi eq, %arg1, %c0_i32 : i32
    %1 = arith.extui %0 : i1 to i32
    %c0_i32_0 = arith.constant 0 : i32
    %2 = arith.cmpi ne, %1, %c0_i32_0 : i32
    scf.if %2 {
      %c0_6 = arith.constant 0 : index
      %c0_7 = arith.constant 0 : index
      %7 = vector.load %arg2[%c0_6, %c0_7] : memref<16x32xf32, #tpu.memory_space<vmem>>, vector<16x32xf32>
      %c0_8 = arith.constant 0 : index
      %c0_9 = arith.constant 0 : index
      %8 = vector.load %arg3[%c0_8, %c0_9] : memref<16x32xf32, #tpu.memory_space<vmem>>, vector<16x32xf32>
      %9 = arith.addf %7, %8 : vector<16x32xf32>
      %c0_10 = arith.constant 0 : index
      %c0_11 = arith.constant 0 : index
      %10 = vector.load %arg7[%c0_10, %c0_11] : memref<16x32xf32, #tpu.memory_space<vmem>>, vector<16x32xf32>
      tpu.vector_store %arg7[%c0_10, %c0_11], %9 {strides = array<i32>} : memref<16x32xf32, #tpu.memory_space<vmem>>, vector<16x32xf32>,
      %11 = arith.mulf %9, %9 : vector<16x32xf32>
      %cst_12 = arith.constant dense<0.000000e+00> : vector<16xf32>
      %12 = vector.multi_reduction <add>, %11, %cst_12 [1] : vector<16x32xf32> to vector<16xf32>
      %13 = vector.shape_cast %12 : vector<16xf32> to vector<16x1xf32>
      %cst_13 = arith.constant 3.200000e+01 : f32
      %14 = vector.broadcast %cst_13 : f32 to vector<16x1xf32>
      %15 = arith.divf %13, %14 : vector<16x1xf32>
      %cst_14 = arith.constant 9.99999974E-6 : f32
      %16 = vector.broadcast %cst_14 : f32 to vector<16x1xf32>
      %17 = arith.addf %15, %16 : vector<16x1xf32>
      %18 = math.rsqrt %17 : vector<16x1xf32>
      %19 = vector.broadcast %18 : vector<16x1xf32> to vector<16x32xf32>
      %20 = arith.mulf %9, %19 : vector<16x32xf32>
      %c0_15 = arith.constant 0 : index
      %c0_16 = arith.constant 0 : index
      %21 = vector.load %arg4[%c0_15, %c0_16] : memref<1x32xf32, #tpu.memory_space<vmem>>, vector<1x32xf32>
      %22 = vector.broadcast %21 : vector<1x32xf32> to vector<16x32xf32>
      %23 = arith.mulf %20, %22 : vector<16x32xf32>
      %c0_17 = arith.constant 0 : index
      %c0_18 = arith.constant 0 : index
      %24 = vector.load %arg8[%c0_17, %c0_18] : memref<16x32xf32, #tpu.memory_space<vmem>>, vector<16x32xf32>
      tpu.vector_store %arg8[%c0_17, %c0_18], %23 {strides = array<i32>} : memref<16x32xf32, #tpu.memory_space<vmem>>, vector<16x32xf32>,
    } else {
    }
    %c0 = arith.constant 0 : index
    %c0_1 = arith.constant 0 : index
    %3 = vector.load %arg8[%c0, %c0_1] : memref<16x32xf32, #tpu.memory_space<vmem>>, vector<16x32xf32>
    %c0_2 = arith.constant 0 : index
    %c0_3 = arith.constant 0 : index
    %4 = vector.load %arg5[%c0_2, %c0_3] : memref<32x96xf32, #tpu.memory_space<vmem>>, vector<32x96xf32>
    %cst = arith.constant dense<0.000000e+00> : vector<16x96xf32>
    %5 = tpu.matmul %3, %4, %cst {dimension_numbers = #tpu.dot_dimension_numbers<[1], [0], [0], [1], [0, 0, 1, 1], [], []>} : vector<16x32xf32>, vector<32x96xf32>, vector<16x96xf32> -> vector<16x96xf32>
    %c0_4 = arith.constant 0 : index
    %c0_5 = arith.constant 0 : index
    %6 = vector.load %arg6[%c0_4, %c0_5] : memref<16x96xf32, #tpu.memory_space<vmem>>, vector<16x96xf32>
    tpu.vector_store %arg6[%c0_4, %c0_5], %5 {strides = array<i32>} : memref<16x96xf32, #tpu.memory_space<vmem>>, vector<16x96xf32>,
    return
  }
  func.func @transform_0(%arg0: i32, %arg1: i32) -> (i32, i32) {
    %c0_i32 = arith.constant 0 : i32
    %c0_i32_0 = arith.constant 0 : i32
    return %arg0, %c0_i32 : i32, i32
  }
  func.func @transform_1(%arg0: i32, %arg1: i32) -> (i32, i32) {
    %c0_i32 = arith.constant 0 : i32
    %c0_i32_0 = arith.constant 0 : i32
    return %arg0, %c0_i32 : i32, i32
  }
  func.func @transform_2(%arg0: i32, %arg1: i32) -> (i32, i32) {
    %c0_i32 = arith.constant 0 : i32
    %c0_i32_0 = arith.constant 0 : i32
    %c0_i32_1 = arith.constant 0 : i32
    return %c0_i32, %c0_i32_0 : i32, i32
  }
  func.func @transform_3(%arg0: i32, %arg1: i32) -> (i32, i32) {
    %c0_i32 = arith.constant 0 : i32
    %c0_i32_0 = arith.constant 0 : i32
    return %c0_i32, %arg1 : i32, i32
  }
  func.func @transform_4(%arg0: i32, %arg1: i32) -> (i32, i32) {
    %c0_i32 = arith.constant 0 : i32
    return %arg0, %arg1 : i32, i32
  }
  func.func @transform_5(%arg0: i32, %arg1: i32) -> (i32, i32) {
    %c0_i32 = arith.constant 0 : i32
    %c0_i32_0 = arith.constant 0 : i32
    return %arg0, %c0_i32 : i32, i32
  }
}

module attributes {stable_mosaic.version = 11 : i64} {
  func.func @_final_norm_kernel(%arg0: i32, %arg1: memref<16x32xf32, #tpu.memory_space<vmem>>, %arg2: memref<16x32xf32, #tpu.memory_space<vmem>>, %arg3: memref<1x32xf32, #tpu.memory_space<vmem>>, %arg4: memref<16x32xf32, #tpu.memory_space<vmem>>) attributes {dimension_semantics = [#tpu.dimension_semantics<parallel>], iteration_bounds = array<i64: 1>, scalar_prefetch = 0 : i64, scratch_operands = 0 : i64, tpu.core_type = #tpu.core_type<tc>, window_params = [{transform_indices = @transform_0, window_bounds = array<i64: 16, 32>}, {transform_indices = @transform_1, window_bounds = array<i64: 16, 32>}, {pipeline_mode = #tpu.pipeline_mode<synchronous>, transform_indices = @transform_2, window_bounds = array<i64: 1, 32>}, {transform_indices = @transform_3, window_bounds = array<i64: 16, 32>}]} {
    %c0 = arith.constant 0 : index
    %c0_0 = arith.constant 0 : index
    %0 = vector.load %arg1[%c0, %c0_0] : memref<16x32xf32, #tpu.memory_space<vmem>>, vector<16x32xf32>
    %c0_1 = arith.constant 0 : index
    %c0_2 = arith.constant 0 : index
    %1 = vector.load %arg2[%c0_1, %c0_2] : memref<16x32xf32, #tpu.memory_space<vmem>>, vector<16x32xf32>
    %2 = arith.addf %0, %1 : vector<16x32xf32>
    %3 = arith.mulf %2, %2 : vector<16x32xf32>
    %cst = arith.constant dense<0.000000e+00> : vector<16xf32>
    %4 = vector.multi_reduction <add>, %3, %cst [1] : vector<16x32xf32> to vector<16xf32>
    %5 = vector.shape_cast %4 : vector<16xf32> to vector<16x1xf32>
    %cst_3 = arith.constant 3.200000e+01 : f32
    %6 = vector.broadcast %cst_3 : f32 to vector<16x1xf32>
    %7 = arith.divf %5, %6 : vector<16x1xf32>
    %cst_4 = arith.constant 9.99999974E-6 : f32
    %8 = vector.broadcast %cst_4 : f32 to vector<16x1xf32>
    %9 = arith.addf %7, %8 : vector<16x1xf32>
    %10 = math.rsqrt %9 : vector<16x1xf32>
    %11 = vector.broadcast %10 : vector<16x1xf32> to vector<16x32xf32>
    %12 = arith.mulf %2, %11 : vector<16x32xf32>
    %c0_5 = arith.constant 0 : index
    %c0_6 = arith.constant 0 : index
    %13 = vector.load %arg3[%c0_5, %c0_6] : memref<1x32xf32, #tpu.memory_space<vmem>>, vector<1x32xf32>
    %14 = vector.broadcast %13 : vector<1x32xf32> to vector<16x32xf32>
    %15 = arith.mulf %12, %14 : vector<16x32xf32>
    %c0_7 = arith.constant 0 : index
    %c0_8 = arith.constant 0 : index
    %16 = vector.load %arg4[%c0_7, %c0_8] : memref<16x32xf32, #tpu.memory_space<vmem>>, vector<16x32xf32>
    tpu.vector_store %arg4[%c0_7, %c0_8], %15 {strides = array<i32>} : memref<16x32xf32, #tpu.memory_space<vmem>>, vector<16x32xf32>,
    return
  }
  func.func @transform_0(%arg0: i32) -> (i32, i32) {
    %c0_i32 = arith.constant 0 : i32
    %c0_i32_0 = arith.constant 0 : i32
    return %arg0, %c0_i32 : i32, i32
  }
  func.func @transform_1(%arg0: i32) -> (i32, i32) {
    %c0_i32 = arith.constant 0 : i32
    %c0_i32_0 = arith.constant 0 : i32
    return %arg0, %c0_i32 : i32, i32
  }
  func.func @transform_2(%arg0: i32) -> (i32, i32) {
    %c0_i32 = arith.constant 0 : i32
    %c0_i32_0 = arith.constant 0 : i32
    %c0_i32_1 = arith.constant 0 : i32
    return %c0_i32, %c0_i32_0 : i32, i32
  }
  func.func @transform_3(%arg0: i32) -> (i32, i32) {
    %c0_i32 = arith.constant 0 : i32
    %c0_i32_0 = arith.constant 0 : i32
    return %arg0, %c0_i32 : i32, i32
  }
}

</mosaic_0001>

<llo_original>
// kernel: isotropic_forward.10
$region0: #{isotropic_forward.10}
  #allocation0 [shape = 'u32[]', space=smem, size = 0x4, offset = 0x4, fixed_abs, tag = 'smem constant byte address 0x4 - core index']
  #allocation1 [shape = 'u32[144,128]{1,0:T(1,128)}', space=vmem, size = 0x12000, scoped, tag = 'internal scratch']
  #allocation2 [shape = 'f32[16,32]{1,0:T(8,128)}', space=vmem, size = 0x2000, scoped, tag = 'scratch operand']
  #allocation3 [shape = 'f32[16,32]{1,0:T(8,128)}', space=vmem, size = 0x2000, scoped, tag = 'scratch operand']
  %s0 = inlined_call_operand.vmem [shape: f32[16,32], index: 0, kind: input, shape index: {}]
  %s1 = inlined_call_operand.vmem [shape: f32[16,32], index: 1, kind: input, shape index: {}, may-alias: {1,7}]
  %s2 = inlined_call_operand.vmem [shape: f32[1,32], index: 2, kind: input, shape index: {}]
  %s3 = inlined_call_operand.vmem [shape: f32[32,64], index: 3, kind: input, shape index: {}]
  %s4 = inlined_call_operand.vmem [shape: f32[32,64], index: 4, kind: input, shape index: {}]
  %s5 = inlined_call_operand.vmem [shape: f32[64,32], index: 5, kind: input, shape index: {}]
  %s6 = inlined_call_operand.vmem [shape: f32[16,32], index: 6, kind: output, shape index: {0}]
  %s7 = inlined_call_operand.vmem [shape: f32[16,32], index: 7, kind: output, shape index: {1}, may-alias: {1,7}]
  %8 = xla_tuple %s6, %s7
  %s9 = sld [smem:[#allocation0]]
  $region50: #{isotropic_forward.10} parent=0
    _
  %s11 = ssub.s32 1, %s9
  %s12 = scalar_select 0, %s11, %s9
  // Predicated region
  $region2: #{isotropic_forward.10} parent=0 // pred_check
    _
  $region3: #{isotropic_forward.10} parent=0 // pred_check_branch
    %14 = sbr.rel (0) target = $region5
  $region4: #{isotropic_forward.10} parent=0 // pred_region
    _
  $region5: #{isotropic_forward.10} parent=0 // pred_fallthru
    _
  // Predicated region
  $region6: #{isotropic_forward.10} parent=0 // pred_check
    _
  $region7: #{isotropic_forward.10} parent=0 // pred_check_branch
    %16 = sbr.rel (0) target = $region9
  $region8: #{isotropic_forward.10} parent=0 // pred_region
    _
  $region9: #{isotropic_forward.10} parent=0 // pred_fallthru
    _
  // Predicated region
  $region10: #{isotropic_forward.10} parent=0 // pred_check
    _
  $region11: #{isotropic_forward.10} parent=0 // pred_check_branch
    %18 = sbr.rel (0) target = $region13
  $region12: #{isotropic_forward.10} parent=0 // pred_region
    _
  $region13: #{isotropic_forward.10} parent=0 // pred_fallthru
    _
  // Predicated region
  $region14: #{isotropic_forward.10} parent=0 // pred_check
    _
  $region15: #{isotropic_forward.10} parent=0 // pred_check_branch
    %20 = sbr.rel (0) target = $region17
  $region16: #{isotropic_forward.10} parent=0 // pred_region
    _
  $region17: #{isotropic_forward.10} parent=0 // pred_fallthru
    _
  // Predicated region
  $region18: #{isotropic_forward.10} parent=0 // pred_check
    _
  $region19: #{isotropic_forward.10} parent=0 // pred_check_branch
    %22 = sbr.rel (0) target = $region21
  $region20: #{isotropic_forward.10} parent=0 // pred_region
    _
  $region21: #{isotropic_forward.10} parent=0 // pred_fallthru
    _
  // Predicated region
  $region22: #{isotropic_forward.10} parent=0 // pred_check
    _
  $region23: #{isotropic_forward.10} parent=0 // pred_check_branch
    %24 = sbr.rel (0) target = $region25
  $region24: #{isotropic_forward.10} parent=0 // pred_region
    _
  $region25: #{isotropic_forward.10} parent=0 // pred_fallthru
    _
  %p25 = scmp.eq.s32.totalorder 0, 0
  // Predicated region
  $region26: #{isotropic_forward.10} parent=0 // pred_check
    %p26 = pneg %p25
  $region27: #{isotropic_forward.10} parent=0 // pred_check_branch
    %28 = sbr.rel (%p26) target = $region29
  $region28: #{isotropic_forward.10} parent=0 // pred_region
    %v29 = vld [vmem:[%s0] sm:$0xff]
    %v30 = vld [vmem:[%s0 + $0x8] sm:$0xff]
    %v31 = vld [vmem:[%s1] sm:$0xff]
    %v32 = vld [vmem:[%s1 + $0x8] sm:$0xff]
    %v33 = vadd.f32 %v29, %v31
    %v34 = vadd.f32 %v30, %v32
    %vm35 = vcmask 261120
    %36 = vst.msk [vmem:[%s7] sm:$0xff] %vm35, %v33
    %37 = vst.msk [vmem:[%s7 + $0x8] sm:$0xff] %vm35, %v34
    %v38 = vmul.f32 %v33, %v33
    %v39 = vmul.f32 %v34, %v34
    %v40 = vsel %vm35, %v38, 0.0
    %41 = vadd.xlane.f32.xlu0 %v40
    %v42 = vpop.xlane.xlu0 %41
    %v43 = vsel %vm35, %v39, 0.0
    %44 = vadd.xlane.f32.xlu0 %v43
    %v45 = vpop.xlane.xlu0 %44
    %v46 = vrcp.pop 32.0
    %v47 = vmul.f32 %v42, %v46
    %v48 = vmul.f32 %v45, %v46
    %v49 = vadd.f32 %v47, 1e-05
    %v50 = vadd.f32 %v48, 1e-05
    %v51 = vrsqrt.pop %v49
    %v52 = vrsqrt.pop %v50
    %v53 = vmul.f32 %v33, %v51
    %v54 = vmul.f32 %v34, %v52
    %v55 = vld [vmem:[%s2] sm:$0x1]
    %v57 = vlaneseq
    %v58 = vshrl.u32 %v57, 7
    %v59 = vsub.s32 0, %v58
    %v60 = vrot.slane %v55, %v59
    %v62 = vmul.f32 %v53, %v60
    %v63 = vmul.f32 %v54, %v60
    %64 = vst.msk [vmem:[#allocation2] sm:$0xff] %vm35, %v62
    %65 = vst.msk [vmem:[#allocation2 + $0x8] sm:$0xff] %vm35, %v63
    %66 = vst.msk [vmem:[#allocation3] sm:$0xff] %vm35, 0.0
    %67 = vst.msk [vmem:[#allocation3 + $0x8] sm:$0xff] %vm35, 0.0
  $region29: #{isotropic_forward.10} parent=0 // pred_fallthru
    _
  %v68 = vld [vmem:[#allocation2] sm:$0xff]
  %v69 = vld [vmem:[#allocation2 + $0x8] sm:$0xff]
  %v70 = vld [vmem:[%s3] sm:$0xff]
  %v71 = vld [vmem:[%s3 + $0x8] sm:$0xff]
  %v72 = vld [vmem:[%s3 + $0x10] sm:$0xff]
  %v73 = vld [vmem:[%s3 + $0x18] sm:$0xff]
  %vm74 = vcmask 261120
  %v76 = vsel %vm74, %v68, 0
  %v79 = vsel %vm74, %v69, 0
  %81 = vmatprep.subr.mxu0 0.0
  %82 = vmatpush1.msra.mxu0 %v70
  %83 = vmatprep.subr.mxu0 0.0
  %84 = vmatpush1.msra.mxu0 %v71
  %85 = vmatprep.subr.mxu0 0.0
  %86 = vmatpush1.msra.mxu0 %v72
  %87 = vmatprep.subr.mxu0 0.0
  %88 = vmatpush1.msra.mxu0 %v73
  %89 = vmatprep.subr.mxu0 0.0
  %90 = vmatpush1.msra.mxu0 0.0
  %91 = vmatprep.subr.mxu0 0.0
  %92 = vmatpush1.msra.mxu0 0.0
  %93 = vmatprep.subr.mxu0 0.0
  %94 = vmatpush1.msra.mxu0 0.0
  %95 = vmatprep.subr.mxu0 0.0
  %96 = vmatpush1.msra.mxu0 0.0
  %97 = vmatprep.subr.mxu0 0.0
  %98 = vmatpush1.msra.mxu0 0.0
  %99 = vmatprep.subr.mxu0 0.0
  %100 = vmatpush1.msra.mxu0 0.0
  %101 = vmatprep.subr.mxu0 0.0
  %102 = vmatpush1.msra.mxu0 0.0
  %103 = vmatprep.subr.mxu0 0.0
  %104 = vmatpush1.msra.mxu0 0.0
  %105 = vmatprep.subr.mxu0 0.0
  %106 = vmatpush1.msra.mxu0 0.0
  %107 = vmatprep.subr.mxu0 0.0
  %108 = vmatpush1.msra.mxu0 0.0
  %109 = vmatprep.subr.mxu0 0.0
  %110 = vmatpush1.msra.mxu0 0.0
  %111 = vmatprep.subr.mxu0 0.0
  %112 = vmatpush1.msra.mxu0 0.0
  %113 = vmatprep.subr.mxu0 0.0
  %114 = vmatpush1.msra.mxu0 0.0
  %115 = vmatprep.subr.mxu0 0.0
  %116 = vmatpush1.msra.mxu0 0.0
  %117 = vmatprep.subr.mxu0 0.0
  %118 = vmatpush1.msra.mxu0 0.0
  %119 = vmatprep.subr.mxu0 0.0
  %120 = vmatpush1.msra.mxu0 0.0
  %121 = vmatprep.subr.mxu0 0.0
  %122 = vmatpush1.msra.mxu0 0.0
  %123 = vmatprep.subr.mxu0 0.0
  %124 = vmatpush1.msra.mxu0 0.0
  %125 = vmatprep.subr.mxu0 0.0
  %126 = vmatpush1.msra.mxu0 0.0
  %127 = vmatprep.subr.mxu0 0.0
  %128 = vmatpush1.msra.mxu0 0.0
  %129 = vmatprep.subr.mxu0 0.0
  %130 = vmatpush1.msra.mxu0 0.0
  %131 = vmatprep.subr.mxu0 0.0
  %132 = vmatpush1.msra.mxu0 0.0
  %133 = vmatprep.subr.mxu0 0.0
  %134 = vmatpush1.msra.mxu0 0.0
  %135 = vmatprep.subr.mxu0 0.0
  %136 = vmatpush1.msra.mxu0 0.0
  %137 = vmatprep.subr.mxu0 0.0
  %138 = vmatpush1.msra.mxu0 0.0
  %139 = vmatprep.subr.mxu0 0.0
  %140 = vmatpush1.msra.mxu0 0.0
  %141 = vmatprep.subr.mxu0 0.0
  %142 = vmatpush1.msra.mxu0 0.0
  %143 = vmatprep.subr.mxu0 0.0
  %144 = vmatpush1.msra.mxu0 0.0
  %145 = vmatprep.mubr.f32.mxu0 0.0
  %146 = vmatmul.mubr.f32.gmra.mrb[0].mxu0 %v76
  %v147 = vpop.f32.mrb[0].mxu0
  %v148 = vadd.f32 0.0, %v147
  %v149 = vpop.f32.mrb[0].mxu0
  %150 = vmatprep.mubr.f32.mxu0 0.0
  %151 = vmatmul.mubr.f32.gmra.mrb[0].mxu0 %v79
  %v152 = vpop.f32.mrb[0].mxu0
  %v153 = vadd.f32 0.0, %v152
  %v154 = vpop.f32.mrb[0].mxu0
  %155 = vdwg.mxu0
  %v156 = vld [vmem:[%s4] sm:$0xff]
  %v157 = vld [vmem:[%s4 + $0x8] sm:$0xff]
  %v158 = vld [vmem:[%s4 + $0x10] sm:$0xff]
  %v159 = vld [vmem:[%s4 + $0x18] sm:$0xff]
  %160 = vmatprep.subr.mxu0 0.0
  %161 = vmatpush1.msra.mxu0 %v156
  %162 = vmatprep.subr.mxu0 0.0
  %163 = vmatpush1.msra.mxu0 %v157
  %164 = vmatprep.subr.mxu0 0.0
  %165 = vmatpush1.msra.mxu0 %v158
  %166 = vmatprep.subr.mxu0 0.0
  %167 = vmatpush1.msra.mxu0 %v159
  %168 = vmatprep.subr.mxu0 0.0
  %169 = vmatpush1.msra.mxu0 0.0
  %170 = vmatprep.subr.mxu0 0.0
  %171 = vmatpush1.msra.mxu0 0.0
  %172 = vmatprep.subr.mxu0 0.0
  %173 = vmatpush1.msra.mxu0 0.0
  %174 = vmatprep.subr.mxu0 0.0
  %175 = vmatpush1.msra.mxu0 0.0
  %176 = vmatprep.subr.mxu0 0.0
  %177 = vmatpush1.msra.mxu0 0.0
  %178 = vmatprep.subr.mxu0 0.0
  %179 = vmatpush1.msra.mxu0 0.0
  %180 = vmatprep.subr.mxu0 0.0
  %181 = vmatpush1.msra.mxu0 0.0
  %182 = vmatprep.subr.mxu0 0.0
  %183 = vmatpush1.msra.mxu0 0.0
  %184 = vmatprep.subr.mxu0 0.0
  %185 = vmatpush1.msra.mxu0 0.0
  %186 = vmatprep.subr.mxu0 0.0
  %187 = vmatpush1.msra.mxu0 0.0
  %188 = vmatprep.subr.mxu0 0.0
  %189 = vmatpush1.msra.mxu0 0.0
  %190 = vmatprep.subr.mxu0 0.0
  %191 = vmatpush1.msra.mxu0 0.0
  %192 = vmatprep.subr.mxu0 0.0
  %193 = vmatpush1.msra.mxu0 0.0
  %194 = vmatprep.subr.mxu0 0.0
  %195 = vmatpush1.msra.mxu0 0.0
  %196 = vmatprep.subr.mxu0 0.0
  %197 = vmatpush1.msra.mxu0 0.0
  %198 = vmatprep.subr.mxu0 0.0
  %199 = vmatpush1.msra.mxu0 0.0
  %200 = vmatprep.subr.mxu0 0.0
  %201 = vmatpush1.msra.mxu0 0.0
  %202 = vmatprep.subr.mxu0 0.0
  %203 = vmatpush1.msra.mxu0 0.0
  %204 = vmatprep.subr.mxu0 0.0
  %205 = vmatpush1.msra.mxu0 0.0
  %206 = vmatprep.subr.mxu0 0.0
  %207 = vmatpush1.msra.mxu0 0.0
  %208 = vmatprep.subr.mxu0 0.0
  %209 = vmatpush1.msra.mxu0 0.0
  %210 = vmatprep.subr.mxu0 0.0
  %211 = vmatpush1.msra.mxu0 0.0
  %212 = vmatprep.subr.mxu0 0.0
  %213 = vmatpush1.msra.mxu0 0.0
  %214 = vmatprep.subr.mxu0 0.0
  %215 = vmatpush1.msra.mxu0 0.0
  %216 = vmatprep.subr.mxu0 0.0
  %217 = vmatpush1.msra.mxu0 0.0
  %218 = vmatprep.subr.mxu0 0.0
  %219 = vmatpush1.msra.mxu0 0.0
  %220 = vmatprep.subr.mxu0 0.0
  %221 = vmatpush1.msra.mxu0 0.0
  %222 = vmatprep.subr.mxu0 0.0
  %223 = vmatpush1.msra.mxu0 0.0
  %224 = vmatprep.mubr.f32.mxu0 0.0
  %225 = vmatmul.mubr.f32.gmra.mrb[0].mxu0 %v76
  %v226 = vpop.f32.mrb[0].mxu0
  %v227 = vadd.f32 0.0, %v226
  %v228 = vpop.f32.mrb[0].mxu0
  %229 = vmatprep.mubr.f32.mxu0 0.0
  %230 = vmatmul.mubr.f32.gmra.mrb[0].mxu0 %v79
  %v231 = vpop.f32.mrb[0].mxu0
  %v232 = vadd.f32 0.0, %v231
  %v233 = vpop.f32.mrb[0].mxu0
  %234 = vdwg.mxu0
  %v235 = vxor.u32 %v227, 2147483648
  %v236 = vxor.u32 %v232, 2147483648
  %v237 = vmul.f32 %v235, 1.442695
  %v238 = vpow.pop %v237
  %v239 = vmul.f32 %v236, 1.442695
  %v240 = vpow.pop %v239
  %v241 = vadd.f32 %v238, 1.0
  %v242 = vadd.f32 %v240, 1.0
  %v243 = vrcp.pop %v241
  %v244 = vmul.f32 1.0, %v243
  %v245 = vrcp.pop %v242
  %v246 = vmul.f32 1.0, %v245
  %v247 = vmul.f32 %v227, %v244
  %v248 = vmul.f32 %v232, %v246
  %v249 = vmul.f32 %v148, %v247
  %v250 = vmul.f32 %v153, %v248
  %v251 = vld [vmem:[#allocation3] sm:$0xff]
  %v252 = vld [vmem:[#allocation3 + $0x8] sm:$0xff]
  %v253 = vld [vmem:[%s5] sm:$0xff]
  %v254 = vld [vmem:[%s5 + $0x8] sm:$0xff]
  %v255 = vld [vmem:[%s5 + $0x10] sm:$0xff]
  %v256 = vld [vmem:[%s5 + $0x18] sm:$0xff]
  %v257 = vld [vmem:[%s5 + $0x20] sm:$0xff]
  %v258 = vld [vmem:[%s5 + $0x28] sm:$0xff]
  %v259 = vld [vmem:[%s5 + $0x30] sm:$0xff]
  %v260 = vld [vmem:[%s5 + $0x38] sm:$0xff]
  %vm261 = vcmask 523264
  %v263 = vsel %vm261, %v249, 0
  %v266 = vsel %vm261, %v250, 0
  %268 = vmatprep.subr.mxu0 0.0
  %269 = vmatpush1.msra.mxu0 %v253
  %270 = vmatprep.subr.mxu0 0.0
  %271 = vmatpush1.msra.mxu0 %v254
  %272 = vmatprep.subr.mxu0 0.0
  %273 = vmatpush1.msra.mxu0 %v255
  %274 = vmatprep.subr.mxu0 0.0
  %275 = vmatpush1.msra.mxu0 %v256
  %276 = vmatprep.subr.mxu0 0.0
  %277 = vmatpush1.msra.mxu0 %v257
  %278 = vmatprep.subr.mxu0 0.0
  %279 = vmatpush1.msra.mxu0 %v258
  %280 = vmatprep.subr.mxu0 0.0
  %281 = vmatpush1.msra.mxu0 %v259
  %282 = vmatprep.subr.mxu0 0.0
  %283 = vmatpush1.msra.mxu0 %v260
  %284 = vmatprep.subr.mxu0 0.0
  %285 = vmatpush1.msra.mxu0 0.0
  %286 = vmatprep.subr.mxu0 0.0
  %287 = vmatpush1.msra.mxu0 0.0
  %288 = vmatprep.subr.mxu0 0.0
  %289 = vmatpush1.msra.mxu0 0.0
  %290 = vmatprep.subr.mxu0 0.0
  %291 = vmatpush1.msra.mxu0 0.0
  %292 = vmatprep.subr.mxu0 0.0
  %293 = vmatpush1.msra.mxu0 0.0
  %294 = vmatprep.subr.mxu0 0.0
  %295 = vmatpush1.msra.mxu0 0.0
  %296 = vmatprep.subr.mxu0 0.0
  %297 = vmatpush1.msra.mxu0 0.0
  %298 = vmatprep.subr.mxu0 0.0
  %299 = vmatpush1.msra.mxu0 0.0
  %300 = vmatprep.subr.mxu0 0.0
  %301 = vmatpush1.msra.mxu0 0.0
  %302 = vmatprep.subr.mxu0 0.0
  %303 = vmatpush1.msra.mxu0 0.0
  %304 = vmatprep.subr.mxu0 0.0
  %305 = vmatpush1.msra.mxu0 0.0
  %306 = vmatprep.subr.mxu0 0.0
  %307 = vmatpush1.msra.mxu0 0.0
  %308 = vmatprep.subr.mxu0 0.0
  %309 = vmatpush1.msra.mxu0 0.0
  %310 = vmatprep.subr.mxu0 0.0
  %311 = vmatpush1.msra.mxu0 0.0
  %312 = vmatprep.subr.mxu0 0.0
  %313 = vmatpush1.msra.mxu0 0.0
  %314 = vmatprep.subr.mxu0 0.0
  %315 = vmatpush1.msra.mxu0 0.0
  %316 = vmatprep.subr.mxu0 0.0
  %317 = vmatpush1.msra.mxu0 0.0
  %318 = vmatprep.subr.mxu0 0.0
  %319 = vmatpush1.msra.mxu0 0.0
  %320 = vmatprep.subr.mxu0 0.0
  %321 = vmatpush1.msra.mxu0 0.0
  %322 = vmatprep.subr.mxu0 0.0
  %323 = vmatpush1.msra.mxu0 0.0
  %324 = vmatprep.subr.mxu0 0.0
  %325 = vmatpush1.msra.mxu0 0.0
  %326 = vmatprep.subr.mxu0 0.0
  %327 = vmatpush1.msra.mxu0 0.0
  %328 = vmatprep.subr.mxu0 0.0
  %329 = vmatpush1.msra.mxu0 0.0
  %330 = vmatprep.subr.mxu0 0.0
  %331 = vmatpush1.msra.mxu0 0.0
  %332 = vmatprep.mubr.f32.mxu0 0.0
  %333 = vmatmul.mubr.f32.gmra.mrb[0].mxu0 %v263
  %v334 = vpop.f32.mrb[0].mxu0
  %v335 = vadd.f32 0.0, %v334
  %v336 = vpop.f32.mrb[0].mxu0
  %337 = vmatprep.mubr.f32.mxu0 0.0
  %338 = vmatmul.mubr.f32.gmra.mrb[0].mxu0 %v266
  %v339 = vpop.f32.mrb[0].mxu0
  %v340 = vadd.f32 0.0, %v339
  %v341 = vpop.f32.mrb[0].mxu0
  %342 = vdwg.mxu0
  %v343 = vadd.f32 %v251, %v335
  %v344 = vadd.f32 %v252, %v340
  %345 = vst.msk [vmem:[#allocation3] sm:$0xff] %vm74, %v343
  %346 = vst.msk [vmem:[#allocation3 + $0x8] sm:$0xff] %vm74, %v344
  // Predicated region
  $region30: #{isotropic_forward.10} parent=0 // pred_check
    %p347 = pneg %p25
  $region31: #{isotropic_forward.10} parent=0 // pred_check_branch
    %349 = sbr.rel (%p347) target = $region33
  $region32: #{isotropic_forward.10} parent=0 // pred_region
    %v350 = vld [vmem:[#allocation3] sm:$0xff]
    %v351 = vld [vmem:[#allocation3 + $0x8] sm:$0xff]
    %352 = vst.msk [vmem:[%s6] sm:$0xff] %vm74, %v350
    %353 = vst.msk [vmem:[%s6 + $0x8] sm:$0xff] %vm74, %v351
  $region33: #{isotropic_forward.10} parent=0 // pred_fallthru
    _
  // Predicated region
  $region34: #{isotropic_forward.10} parent=0 // pred_check
    _
  $region35: #{isotropic_forward.10} parent=0 // pred_check_branch
    %355 = sbr.rel (0) target = $region37
  $region36: #{isotropic_forward.10} parent=0 // pred_region
    _
  $region37: #{isotropic_forward.10} parent=0 // pred_fallthru
    _
  // Predicated region
  $region38: #{isotropic_forward.10} parent=0 // pred_check
    _
  $region39: #{isotropic_forward.10} parent=0 // pred_check_branch
    %357 = sbr.rel (0) target = $region41
  $region40: #{isotropic_forward.10} parent=0 // pred_region
    _
  $region41: #{isotropic_forward.10} parent=0 // pred_fallthru
    _
  // Predicated region
  $region42: #{isotropic_forward.10} parent=0 // pred_check
    _
  $region43: #{isotropic_forward.10} parent=0 // pred_check_branch
    %359 = sbr.rel (0) target = $region45
  $region44: #{isotropic_forward.10} parent=0 // pred_region
    _
  $region45: #{isotropic_forward.10} parent=0 // pred_fallthru
    _
  // Predicated region
  $region46: #{isotropic_forward.10} parent=0 // pred_check
    _
  $region47: #{isotropic_forward.10} parent=0 // pred_check_branch
    %361 = sbr.rel (0) target = $region49
  $region48: #{isotropic_forward.10} parent=0 // pred_region
    _
  $region49: #{isotropic_forward.10} parent=0 // pred_fallthru
    _

// kernel: isotropic_forward.7
$region0: #{isotropic_forward.7}
  #allocation0 [shape = 'u32[]', space=smem, size = 0x4, offset = 0x4, fixed_abs, tag = 'smem constant byte address 0x4 - core index']
  #allocation1 [shape = 'u32[144,128]{1,0:T(1,128)}', space=vmem, size = 0x12000, scoped, tag = 'internal scratch']
  #allocation2 [shape = 'f32[8,1]{1,0:T(8,128)}', space=vmem, size = 0x1000, scoped, tag = 'scratch operand']
  #allocation3 [shape = 'f32[8,1]{1,0:T(8,128)}', space=vmem, size = 0x1000, scoped, tag = 'scratch operand']
  #allocation4 [shape = 'f32[8,8]{1,0:T(8,128)}', space=vmem, size = 0x1000, scoped, tag = 'scratch operand']
  #allocation5 [shape = 'f32[8,32]{1,0:T(8,128)}', space=vmem, size = 0x1000, scoped, tag = 'scratch operand']
  %s0 = inlined_call_operand.vmem [shape: f32[2,4,8,8], index: 0, kind: input, shape index: {}]
  %s1 = inlined_call_operand.vmem [shape: f32[2,4,8,8], index: 1, kind: input, shape index: {}]
  %s2 = inlined_call_operand.vmem [shape: f32[2,4,8,8], index: 2, kind: input, shape index: {}]
  %s3 = inlined_call_operand.vmem [shape: f32[32,32], index: 3, kind: input, shape index: {}]
  %s4 = inlined_call_operand.vmem [shape: f32[2,8,32], index: 4, kind: output, shape index: {}]
  %s5 = sld [smem:[#allocation0]]
  $region69: #{isotropic_forward.7} parent=0
    _
  %s7 = ssub.s32 1, %s5
  %s8 = scalar_select 0, %s7, %s5
  loop: start=0, step=1, limit=10
  $region2: #{isotropic_forward.7} parent=0 // loop_pre_header
    _
  $region3: #{isotropic_forward.7} parent=0 // loop_header
    %s10 = sphi 0, %s14
    %p11 = scmp.ge.s32.totalorder %s10, 10
    %s17 = sphi 0, %s43
    %s18 = sphi 0, %s39
    %s19 = sphi 0, %s35
    %s20 = sphi 0, %s31
    %s21 = sphi 0, %s17
    %s22 = sphi 0, %s18
    %s23 = sphi 0, %s19
    %s24 = sphi 0, %s20
    %s25 = sphi 0, %s21
    %s26 = sphi 0, %s22
    %s27 = sphi 0, %s23
    %s28 = sphi 0, %s24
    %s50 = sphi 0, %s52
    %s53 = sphi 0, %s50
    %s54 = sphi 0, %s53
    %s70 = sphi 0, %s54
    %s80 = sphi 0, %s82
    %s83 = sphi 0, %s80
    %s84 = sphi 0, %s83
    %s100 = sphi 0, %s84
    %s110 = sphi 0, %s112
    %s113 = sphi 0, %s110
    %s114 = sphi 0, %s113
    %s130 = sphi 0, %s114
    %s136 = sphi 0, %s138
    %s139 = sphi 0, %s136
    %s140 = sphi 0, %s139
    %s156 = sphi 0, %s140
    %s164 = sphi 0, %s166
    %s167 = sphi 0, %s164
    %s168 = sphi 0, %s167
    %s184 = sphi 0, %s168
  $region4: #{isotropic_forward.7} parent=0 // loop_header_branch
    %13 = sbr.rel (%p11) target = $region8
  $region5: #{isotropic_forward.7} parent=0 // loop_body
    %s15 = ssub.s32 %s10, 1
    %s16 = ssub.s32 %s10, 2
    %s29 = sadd.s32 1, %s20
    %p30 = scmp.ge.s32.totalorder %s29, 1
    %s31 = scalar_select %p30, 0, %s29
    %s32 = sadd.s32 1, %s19
    %s33 = scalar_select %p30, %s32, %s19
    %p34 = scmp.ge.s32.totalorder %s33, 4
    %s35 = scalar_select %p34, 0, %s33
    %s36 = sadd.s32 1, %s18
    %s37 = scalar_select %p34, %s36, %s18
    %p38 = scmp.ge.s32.totalorder %s37, 1
    %s39 = scalar_select %p38, 0, %s37
    %s40 = sadd.s32 1, %s17
    %s41 = scalar_select %p38, %s40, %s17
    %p42 = scmp.ge.s32.totalorder %s41, 2
    %s43 = scalar_select %p42, 0, %s41
    %s44 = ssub.s32 %s17, %s43
    %s45 = ssub.s32 %s19, %s35
    %s46 = sor.u32 %s44, %s45
    %s47 = ssub.s32 %s18, %s39
    %s48 = sor.u32 %s46, %s47
    %p49 = scmp.eq.s32.totalorder %s48, 0
    %s51 = sadd.s32 %s50, 1
    %s52 = scalar_select %p49, %s50, %s51
    %p55 = pneg %p49
    %p56 = scmp.eq.s32.totalorder %s10, 7
    %p57 = por %p55, %p56
    %p58 = scmp.ne.s32.totalorder %s50, %s53
    %p59 = scmp.eq.s32.totalorder %s10, 0
    %p60 = por %p58, %p59
    %p61 = scmp.ne.s32.totalorder %s50, %s53
    %p62 = scmp.eq.s32.totalorder %s15, 7
    %p63 = por %p61, %p62
    %p64 = scmp.ne.s32.totalorder %s53, %s54
    %p65 = scmp.eq.s32.totalorder %s15, 0
    %p66 = por %p64, %p65
    %p67 = scmp.ne.s32.totalorder %s53, %s54
    %p68 = scmp.eq.s32.totalorder %s16, 7
    %p69 = por %p67, %p68
    %p71 = scmp.ne.s32.totalorder %s54, %s70
    %p72 = scmp.eq.s32.totalorder %s16, 0
    %p73 = por %p71, %p72
    %s74 = ssub.s32 %s17, %s43
    %s75 = ssub.s32 %s19, %s35
    %s76 = sor.u32 %s74, %s75
    %s77 = ssub.s32 %s20, %s31
    %s78 = sor.u32 %s76, %s77
    %p79 = scmp.eq.s32.totalorder %s78, 0
    %s81 = sadd.s32 %s80, 1
    %s82 = scalar_select %p79, %s80, %s81
    %p85 = pneg %p79
    %p86 = scmp.eq.s32.totalorder %s10, 7
    %p87 = por %p85, %p86
    %p88 = scmp.ne.s32.totalorder %s80, %s83
    %p89 = scmp.eq.s32.totalorder %s10, 0
    %p90 = por %p88, %p89
    %p91 = scmp.ne.s32.totalorder %s80, %s83
    %p92 = scmp.eq.s32.totalorder %s15, 7
    %p93 = por %p91, %p92
    %p94 = scmp.ne.s32.totalorder %s83, %s84
    %p95 = scmp.eq.s32.totalorder %s15, 0
    %p96 = por %p94, %p95
    %p97 = scmp.ne.s32.totalorder %s83, %s84
    %p98 = scmp.eq.s32.totalorder %s16, 7
    %p99 = por %p97, %p98
    %p101 = scmp.ne.s32.totalorder %s84, %s100
    %p102 = scmp.eq.s32.totalorder %s16, 0
    %p103 = por %p101, %p102
    %s104 = ssub.s32 %s17, %s43
    %s105 = ssub.s32 %s19, %s35
    %s106 = sor.u32 %s104, %s105
    %s107 = ssub.s32 %s20, %s31
    %s108 = sor.u32 %s106, %s107
    %p109 = scmp.eq.s32.totalorder %s108, 0
    %s111 = sadd.s32 %s110, 1
    %s112 = scalar_select %p109, %s110, %s111
    %p115 = pneg %p109
    %p116 = scmp.eq.s32.totalorder %s10, 7
    %p117 = por %p115, %p116
    %p118 = scmp.ne.s32.totalorder %s110, %s113
    %p119 = scmp.eq.s32.totalorder %s10, 0
    %p120 = por %p118, %p119
    %p121 = scmp.ne.s32.totalorder %s110, %s113
    %p122 = scmp.eq.s32.totalorder %s15, 7
    %p123 = por %p121, %p122
    %p124 = scmp.ne.s32.totalorder %s113, %s114
    %p125 = scmp.eq.s32.totalorder %s15, 0
    %p126 = por %p124, %p125
    %p127 = scmp.ne.s32.totalorder %s113, %s114
    %p128 = scmp.eq.s32.totalorder %s16, 7
    %p129 = por %p127, %p128
    %p131 = scmp.ne.s32.totalorder %s114, %s130
    %p132 = scmp.eq.s32.totalorder %s16, 0
    %p133 = por %p131, %p132
    %s134 = ssub.s32 %s19, %s35
    %p135 = scmp.eq.s32.totalorder %s134, 0
    %s137 = sadd.s32 %s136, 1
    %s138 = scalar_select %p135, %s136, %s137
    %p141 = pneg %p135
    %p142 = scmp.eq.s32.totalorder %s10, 7
    %p143 = por %p141, %p142
    %p144 = scmp.ne.s32.totalorder %s136, %s139
    %p145 = scmp.eq.s32.totalorder %s10, 0
    %p146 = por %p144, %p145
    %p147 = scmp.ne.s32.totalorder %s136, %s139
    %p148 = scmp.eq.s32.totalorder %s15, 7
    %p149 = por %p147, %p148
    %p150 = scmp.ne.s32.totalorder %s139, %s140
    %p151 = scmp.eq.s32.totalorder %s15, 0
    %p152 = por %p150, %p151
    %p153 = scmp.ne.s32.totalorder %s139, %s140
    %p154 = scmp.eq.s32.totalorder %s16, 7
    %p155 = por %p153, %p154
    %p157 = scmp.ne.s32.totalorder %s140, %s156
    %p158 = scmp.eq.s32.totalorder %s16, 0
    %p159 = por %p157, %p158
    %s160 = ssub.s32 %s17, %s43
    %s161 = ssub.s32 %s18, %s39
    %s162 = sor.u32 %s160, %s161
    %p163 = scmp.eq.s32.totalorder %s162, 0
    %s165 = sadd.s32 %s164, 1
    %s166 = scalar_select %p163, %s164, %s165
    %p169 = pneg %p163
    %p170 = scmp.eq.s32.totalorder %s10, 7
    %p171 = por %p169, %p170
    %p172 = scmp.ne.s32.totalorder %s164, %s167
    %p173 = scmp.eq.s32.totalorder %s10, 0
    %p174 = por %p172, %p173
    %p175 = scmp.ne.s32.totalorder %s164, %s167
    %p176 = scmp.eq.s32.totalorder %s15, 7
    %p177 = por %p175, %p176
    %p178 = scmp.ne.s32.totalorder %s167, %s168
    %p179 = scmp.eq.s32.totalorder %s15, 0
    %p180 = por %p178, %p179
    %p181 = scmp.ne.s32.totalorder %s167, %s168
    %p182 = scmp.eq.s32.totalorder %s16, 7
    %p183 = por %p181, %p182
    %p185 = scmp.ne.s32.totalorder %s168, %s184
    %p186 = scmp.eq.s32.totalorder %s16, 0
    %p187 = por %p185, %p186
    %p188 = scmp.le.s32.totalorder 1, %s10
    %p189 = scmp.lt.s32.totalorder %s10, 9
    %p190 = pnand %p188, %p189
    %p191 = pneg %p190
    // Predicated region
    $region9: #{isotropic_forward.7} parent=5 // pred_check
      _
    $region10: #{isotropic_forward.7} parent=5 // pred_check_branch
      %193 = sbr.rel (%p190) target = $region12
    $region11: #{isotropic_forward.7} parent=5 // pred_region
      %s194 = ssub.s32 %s10, 1
    $region12: #{isotropic_forward.7} parent=5 // pred_fallthru
      _
    %p195 = scmp.lt.s32.totalorder %s10, 8
    // Predicated region
    $region13: #{isotropic_forward.7} parent=5 // pred_check
      %p196 = pneg %p195
    $region14: #{isotropic_forward.7} parent=5 // pred_check_branch
      %198 = sbr.rel (%p196) target = $region16
    $region15: #{isotropic_forward.7} parent=5 // pred_region
      // Predicated region
      $region17: #{isotropic_forward.7} parent=15 // pred_check
        %p199 = pneg %p60
      $region18: #{isotropic_forward.7} parent=15 // pred_check_branch
        %201 = sbr.rel (%p199) target = $region20
      $region19: #{isotropic_forward.7} parent=15 // pred_region
        %p202 = scmp.lt.s32.totalorder %s17, 1
        %s203 = scalar_select %p202, %s17, 1
        %p204 = scmp.lt.s32.totalorder %s19, 3
        %s205 = scalar_select %p204, %s19, 3
        %p206 = scmp.lt.s32.totalorder %s18, 0
        %s207 = scalar_select %p206, %s18, 0
        %s208 = sadd.s32 %s207, %s205
        %s209 = smul.addr %s203, 4
        %s210 = sadd.s32 %s208, %s209
        %s211 = smul.addr %s210, 8
        %s212 = scalar_lea.vmem %s0, %s211
      $region20: #{isotropic_forward.7} parent=15 // pred_fallthru
        _
      // Predicated region
      $region21: #{isotropic_forward.7} parent=15 // pred_check
        %p213 = pneg %p90
      $region22: #{isotropic_forward.7} parent=15 // pred_check_branch
        %215 = sbr.rel (%p213) target = $region24
      $region23: #{isotropic_forward.7} parent=15 // pred_region
        %p216 = scmp.lt.s32.totalorder %s17, 1
        %s217 = scalar_select %p216, %s17, 1
        %p218 = scmp.lt.s32.totalorder %s19, 3
        %s219 = scalar_select %p218, %s19, 3
        %p220 = scmp.lt.s32.totalorder %s20, 0
        %s221 = scalar_select %p220, %s20, 0
        %s222 = sadd.s32 %s221, %s219
        %s223 = smul.addr %s217, 4
        %s224 = sadd.s32 %s222, %s223
        %s225 = smul.addr %s224, 8
        %s226 = scalar_lea.vmem %s1, %s225
      $region24: #{isotropic_forward.7} parent=15 // pred_fallthru
        _
      // Predicated region
      $region25: #{isotropic_forward.7} parent=15 // pred_check
        %p227 = pneg %p120
      $region26: #{isotropic_forward.7} parent=15 // pred_check_branch
        %229 = sbr.rel (%p227) target = $region28
      $region27: #{isotropic_forward.7} parent=15 // pred_region
        %p230 = scmp.lt.s32.totalorder %s17, 1
        %s231 = scalar_select %p230, %s17, 1
        %p232 = scmp.lt.s32.totalorder %s19, 3
        %s233 = scalar_select %p232, %s19, 3
        %p234 = scmp.lt.s32.totalorder %s20, 0
        %s235 = scalar_select %p234, %s20, 0
        %s236 = sadd.s32 %s235, %s233
        %s237 = smul.addr %s231, 4
        %s238 = sadd.s32 %s236, %s237
        %s239 = smul.addr %s238, 8
        %s240 = scalar_lea.vmem %s2, %s239
      $region28: #{isotropic_forward.7} parent=15 // pred_fallthru
        _
      // Predicated region
      $region29: #{isotropic_forward.7} parent=15 // pred_check
        %p241 = pneg %p146
      $region30: #{isotropic_forward.7} parent=15 // pred_check_branch
        %243 = sbr.rel (%p241) target = $region32
      $region31: #{isotropic_forward.7} parent=15 // pred_region
        %p244 = scmp.lt.s32.totalorder %s19, 3
        %s245 = scalar_select %p244, %s19, 3
        %s246 = smul.addr %s245, 8
        %s247 = scalar_lea.vmem %s3, %s246
      $region32: #{isotropic_forward.7} parent=15 // pred_fallthru
        _
    $region16: #{isotropic_forward.7} parent=5 // pred_fallthru
      _
    %p248 = scmp.le.s32.totalorder 1, %s10
    %p249 = scmp.lt.s32.totalorder %s10, 9
    %p250 = pnand %p248, %p249
    %p251 = pneg %p250
    // Predicated region
    $region33: #{isotropic_forward.7} parent=5 // pred_check
      _
    $region34: #{isotropic_forward.7} parent=5 // pred_check_branch
      %253 = sbr.rel (%p250) target = $region36
    $region35: #{isotropic_forward.7} parent=5 // pred_region
      %s254 = ssub.s32 %s10, 1
      %p255 = scmp.lt.s32.totalorder %s21, 1
      %s256 = scalar_select %p255, %s21, 1
      %p257 = scmp.lt.s32.totalorder %s23, 3
      %s258 = scalar_select %p257, %s23, 3
      %p259 = scmp.lt.s32.totalorder %s22, 0
      %s260 = scalar_select %p259, %s22, 0
      %s261 = sadd.s32 %s260, %s258
      %s262 = smul.addr %s256, 4
      %s263 = sadd.s32 %s261, %s262
      %s264 = smul.addr %s263, 8
      %s265 = scalar_lea.vmem %s0, %s264
      %p266 = pneg %p66
      %p267 = pneg %p63
      %p268 = scmp.lt.s32.totalorder %s21, 1
      %s269 = scalar_select %p268, %s21, 1
      %p270 = scmp.lt.s32.totalorder %s23, 3
      %s271 = scalar_select %p270, %s23, 3
      %p272 = scmp.lt.s32.totalorder %s24, 0
      %s273 = scalar_select %p272, %s24, 0
      %s274 = sadd.s32 %s273, %s271
      %s275 = smul.addr %s269, 4
      %s276 = sadd.s32 %s274, %s275
      %s277 = smul.addr %s276, 8
      %s278 = scalar_lea.vmem %s1, %s277
      %p279 = pneg %p96
      %p280 = pneg %p93
      %p281 = scmp.lt.s32.totalorder %s21, 1
      %s282 = scalar_select %p281, %s21, 1
      %p283 = scmp.lt.s32.totalorder %s23, 3
      %s284 = scalar_select %p283, %s23, 3
      %p285 = scmp.lt.s32.totalorder %s24, 0
      %s286 = scalar_select %p285, %s24, 0
      %s287 = sadd.s32 %s286, %s284
      %s288 = smul.addr %s282, 4
      %s289 = sadd.s32 %s287, %s288
      %s290 = smul.addr %s289, 8
      %s291 = scalar_lea.vmem %s2, %s290
      %p292 = pneg %p126
      %p293 = pneg %p123
      %p294 = scmp.lt.s32.totalorder %s23, 3
      %s295 = scalar_select %p294, %s23, 3
      %s296 = smul.addr %s295, 8
      %s297 = scalar_lea.vmem %s3, %s296
      %p298 = pneg %p152
      %p299 = pneg %p149
      %p300 = pneg %p180
      %p301 = pneg %p177
      %p302 = scmp.lt.s32.totalorder %s21, 1
      %s303 = scalar_select %p302, %s21, 1
      %p304 = scmp.lt.s32.totalorder %s22, 0
      %s305 = scalar_select %p304, %s22, 0
      %s306 = sadd.s32 %s305, %s303
      %s307 = smul.addr %s306, 8
      %s308 = scalar_lea.vmem %s4, %s307
      %p309 = scmp.lt.s32.totalorder %s21, 1
      %s310 = scalar_select %p309, %s21, 1
      %p311 = scmp.lt.s32.totalorder %s23, 3
      %s312 = scalar_select %p311, %s23, 3
      %p313 = scmp.lt.s32.totalorder %s22, 0
      %s314 = scalar_select %p313, %s22, 0
      %s315 = sadd.s32 %s314, %s312
      %s316 = smul.addr %s310, 4
      %s317 = sadd.s32 %s315, %s316
      %s318 = smul.addr %s317, 8
      %s319 = scalar_lea.vmem %s0, %s318
      %p320 = scmp.lt.s32.totalorder %s21, 1
      %s321 = scalar_select %p320, %s21, 1
      %p322 = scmp.lt.s32.totalorder %s23, 3
      %s323 = scalar_select %p322, %s23, 3
      %p324 = scmp.lt.s32.totalorder %s24, 0
      %s325 = scalar_select %p324, %s24, 0
      %s326 = sadd.s32 %s325, %s323
      %s327 = smul.addr %s321, 4
      %s328 = sadd.s32 %s326, %s327
      %s329 = smul.addr %s328, 8
      %s330 = scalar_lea.vmem %s1, %s329
      %p331 = scmp.lt.s32.totalorder %s21, 1
      %s332 = scalar_select %p331, %s21, 1
      %p333 = scmp.lt.s32.totalorder %s23, 3
      %s334 = scalar_select %p333, %s23, 3
      %p335 = scmp.lt.s32.totalorder %s24, 0
      %s336 = scalar_select %p335, %s24, 0
      %s337 = sadd.s32 %s336, %s334
      %s338 = smul.addr %s332, 4
      %s339 = sadd.s32 %s337, %s338
      %s340 = smul.addr %s339, 8
      %s341 = scalar_lea.vmem %s2, %s340
      %p342 = scmp.lt.s32.totalorder %s23, 3
      %s343 = scalar_select %p342, %s23, 3
      %s344 = smul.addr %s343, 8
      %s345 = scalar_lea.vmem %s3, %s344
      %p346 = scmp.lt.s32.totalorder %s21, 1
      %s347 = scalar_select %p346, %s21, 1
      %p348 = scmp.lt.s32.totalorder %s22, 0
      %s349 = scalar_select %p348, %s22, 0
      %s350 = sadd.s32 %s349, %s347
      %s351 = smul.addr %s350, 8
      %s352 = scalar_lea.vmem %s4, %s351
      %p353 = scmp.eq.s32.totalorder %s24, 0
      // Predicated region
      $region37: #{isotropic_forward.7} parent=35 // pred_check
        %p354 = pneg %p353
      $region38: #{isotropic_forward.7} parent=35 // pred_check_branch
        %356 = sbr.rel (%p354) target = $region40
      $region39: #{isotropic_forward.7} parent=35 // pred_region
        %vm357 = vcmask 7168
        %358 = vst.msk [vmem:[#allocation2] sm:$0xff] %vm357, -1e+30
        %359 = vst.msk [vmem:[#allocation3] sm:$0xff] %vm357, 0.0
        %vm360 = vcmask 64512
        %361 = vst.msk [vmem:[#allocation4] sm:$0xff] %vm360, 0.0
      $region40: #{isotropic_forward.7} parent=35 // pred_fallthru
        _
      %p362 = scmp.eq.s32.totalorder %s23, 0
      %p363 = pnand %p353, %p362
      %p364 = pneg %p363
      // Predicated region
      $region41: #{isotropic_forward.7} parent=35 // pred_check
        _
      $region42: #{isotropic_forward.7} parent=35 // pred_check_branch
        %366 = sbr.rel (%p363) target = $region44
      $region43: #{isotropic_forward.7} parent=35 // pred_region
        %vm367 = vcmask 261120
        %368 = vst.msk [vmem:[#allocation5] sm:$0xff] %vm367, 0.0
      $region44: #{isotropic_forward.7} parent=35 // pred_fallthru
        _
      %s369 = smul.u32 %s24, 8
      %s370 = smul.u32 %s22, 8
      %s371 = sadd.s32 %s370, 7
      %p372 = scmp.le.s32.totalorder %s369, %s371
      // Predicated region
      $region45: #{isotropic_forward.7} parent=35 // pred_check
        %p373 = pneg %p372
      $region46: #{isotropic_forward.7} parent=35 // pred_check_branch
        %375 = sbr.rel (%p373) target = $region48
      $region47: #{isotropic_forward.7} parent=35 // pred_region
        %v376 = vld [vmem:[%s319] sm:$0xff]
        %v377 = vmul.f32 %v376, 0.35355338
        %v378 = vld [vmem:[%s330] sm:$0xff]
        %v379 = vld [vmem:[%s341] sm:$0xff]
        %vm380 = vcmask 64512
        %v382 = vsel %vm380, %v377, 0
        %v385 = vsel %vm380, %v378, 0
        %387 = vmatprep.subr.mxu0 0.0
        %388 = vmatpush1.xpose.msra.mxu0 %v385
        %389 = vmatprep.subr.mxu0 0.0
        %390 = vmatpush1.xpose.msra.mxu0 0.0
        %391 = vmatprep.subr.mxu0 0.0
        %392 = vmatpush1.xpose.msra.mxu0 0.0
        %393 = vmatprep.subr.mxu0 0.0
        %394 = vmatpush1.xpose.msra.mxu0 0.0
        %395 = vmatprep.subr.mxu0 0.0
        %396 = vmatpush1.xpose.msra.mxu0 0.0
        %397 = vmatprep.subr.mxu0 0.0
        %398 = vmatpush1.xpose.msra.mxu0 0.0
        %399 = vmatprep.subr.mxu0 0.0
        %400 = vmatpush1.xpose.msra.mxu0 0.0
        %401 = vmatprep.subr.mxu0 0.0
        %402 = vmatpush1.xpose.msra.mxu0 0.0
        %403 = vmatprep.subr.mxu0 0.0
        %404 = vmatpush1.xpose.msra.mxu0 0.0
        %405 = vmatprep.subr.mxu0 0.0
        %406 = vmatpush1.xpose.msra.mxu0 0.0
        %407 = vmatprep.subr.mxu0 0.0
        %408 = vmatpush1.xpose.msra.mxu0 0.0
        %409 = vmatprep.subr.mxu0 0.0
        %410 = vmatpush1.xpose.msra.mxu0 0.0
        %411 = vmatprep.subr.mxu0 0.0
        %412 = vmatpush1.xpose.msra.mxu0 0.0
        %413 = vmatprep.subr.mxu0 0.0
        %414 = vmatpush1.xpose.msra.mxu0 0.0
        %415 = vmatprep.subr.mxu0 0.0
        %416 = vmatpush1.xpose.msra.mxu0 0.0
        %417 = vmatprep.subr.mxu0 0.0
        %418 = vmatpush1.xpose.msra.mxu0 0.0
        %419 = vmatprep.subr.mxu0 0.0
        %420 = vmatpush1.xpose.msra.mxu0 0.0
        %421 = vmatprep.subr.mxu0 0.0
        %422 = vmatpush1.xpose.msra.mxu0 0.0
        %423 = vmatprep.subr.mxu0 0.0
        %424 = vmatpush1.xpose.msra.mxu0 0.0
        %425 = vmatprep.subr.mxu0 0.0
        %426 = vmatpush1.xpose.msra.mxu0 0.0
        %427 = vmatprep.subr.mxu0 0.0
        %428 = vmatpush1.xpose.msra.mxu0 0.0
        %429 = vmatprep.subr.mxu0 0.0
        %430 = vmatpush1.xpose.msra.mxu0 0.0
        %431 = vmatprep.subr.mxu0 0.0
        %432 = vmatpush1.xpose.msra.mxu0 0.0
        %433 = vmatprep.subr.mxu0 0.0
        %434 = vmatpush1.xpose.msra.mxu0 0.0
        %435 = vmatprep.subr.mxu0 0.0
        %436 = vmatpush1.xpose.msra.mxu0 0.0
        %437 = vmatprep.subr.mxu0 0.0
        %438 = vmatpush1.xpose.msra.mxu0 0.0
        %439 = vmatprep.subr.mxu0 0.0
        %440 = vmatpush1.xpose.msra.mxu0 0.0
        %441 = vmatprep.subr.mxu0 0.0
        %442 = vmatpush1.xpose.msra.mxu0 0.0
        %443 = vmatprep.subr.mxu0 0.0
        %444 = vmatpush1.xpose.msra.mxu0 0.0
        %445 = vmatprep.subr.mxu0 0.0
        %446 = vmatpush1.xpose.msra.mxu0 0.0
        %447 = vmatprep.subr.mxu0 0.0
        %448 = vmatpush1.xpose.msra.mxu0 0.0
        %449 = vmatprep.subr.mxu0 0.0
        %450 = vmatpush1.xpose.msra.mxu0 0.0
        %451 = vmatprep.mubr.f32.mxu0 0.0
        %452 = vmatmul.mubr.f32.gmra.mrb[0].mxu0 %v382
        %v453 = vpop.f32.mrb[0].mxu0
        %v454 = vadd.f32 0.0, %v453
        %v455 = vpop.f32.mrb[0].mxu0
        %456 = vdwg.mxu0
        %v457 = vlaneseq
        %v458 = vshrl.u32 %v457, 7
        %v459 = vstv %s370
        %v460 = vadd.s32 %v459, %v458
        %v461 = vlaneseq
        %v462 = vand.u32 %v461, 127
        %v463 = vstv %s369
        %v464 = vadd.s32 %v463, %v462
        %vm465 = vcmp.le.s32.totalorder %v464, %v460
        %v466 = vsel %vm465, %v454, -1e+30
        %v467 = vld [vmem:[#allocation2] sm:$0xff]
        %v468 = vsel %vm380, %v466, -inf
        %469 = vmax.xlane.f32.xlu0 %v468
        %v470 = vpop.xlane.xlu0 %469
        %v471 = vmax.f32 %v467, %v470
        %v472 = vsub.f32 %v467, %v471
        %v473 = vmul.f32 %v472, 1.442695
        %v474 = vpow.pop %v473
        %476 = vset.pattern.permute.xlu0 0
        %477 = vperm.xlu0 %476, %v471
        %v478 = vpop.permute.xlu0 %477
        %v480 = vsub.f32 %v466, %v478
        %v481 = vmul.f32 %v480, 1.442695
        %v482 = vpow.pop %v481
        %v483 = vld [vmem:[#allocation3] sm:$0xff]
        %v484 = vmul.f32 %v474, %v483
        %v485 = vsel %vm380, %v482, 0.0
        %486 = vadd.xlane.f32.xlu0 %v485
        %v487 = vpop.xlane.xlu0 %486
        %v488 = vadd.f32 %v484, %v487
        %vm489 = vcmask 7168
        %490 = vst.msk [vmem:[#allocation3] sm:$0xff] %vm489, %v488
        %v491 = vld [vmem:[#allocation4] sm:$0xff]
        %493 = vset.pattern.permute.xlu0 0
        %494 = vperm.xlu0 %493, %v474
        %v495 = vpop.permute.xlu0 %494
        %v497 = vmul.f32 %v495, %v491
        %v499 = vsel %vm380, %v482, 0
        %501 = vmatprep.subr.mxu0 0.0
        %502 = vmatpush1.msra.mxu0 %v379
        %503 = vmatprep.subr.mxu0 0.0
        %504 = vmatpush1.msra.mxu0 0.0
        %505 = vmatprep.subr.mxu0 0.0
        %506 = vmatpush1.msra.mxu0 0.0
        %507 = vmatprep.subr.mxu0 0.0
        %508 = vmatpush1.msra.mxu0 0.0
        %509 = vmatprep.subr.mxu0 0.0
        %510 = vmatpush1.msra.mxu0 0.0
        %511 = vmatprep.subr.mxu0 0.0
        %512 = vmatpush1.msra.mxu0 0.0
        %513 = vmatprep.subr.mxu0 0.0
        %514 = vmatpush1.msra.mxu0 0.0
        %515 = vmatprep.subr.mxu0 0.0
        %516 = vmatpush1.msra.mxu0 0.0
        %517 = vmatprep.subr.mxu0 0.0
        %518 = vmatpush1.msra.mxu0 0.0
        %519 = vmatprep.subr.mxu0 0.0
        %520 = vmatpush1.msra.mxu0 0.0
        %521 = vmatprep.subr.mxu0 0.0
        %522 = vmatpush1.msra.mxu0 0.0
        %523 = vmatprep.subr.mxu0 0.0
        %524 = vmatpush1.msra.mxu0 0.0
        %525 = vmatprep.subr.mxu0 0.0
        %526 = vmatpush1.msra.mxu0 0.0
        %527 = vmatprep.subr.mxu0 0.0
        %528 = vmatpush1.msra.mxu0 0.0
        %529 = vmatprep.subr.mxu0 0.0
        %530 = vmatpush1.msra.mxu0 0.0
        %531 = vmatprep.subr.mxu0 0.0
        %532 = vmatpush1.msra.mxu0 0.0
        %533 = vmatprep.subr.mxu0 0.0
        %534 = vmatpush1.msra.mxu0 0.0
        %535 = vmatprep.subr.mxu0 0.0
        %536 = vmatpush1.msra.mxu0 0.0
        %537 = vmatprep.subr.mxu0 0.0
        %538 = vmatpush1.msra.mxu0 0.0
        %539 = vmatprep.subr.mxu0 0.0
        %540 = vmatpush1.msra.mxu0 0.0
        %541 = vmatprep.subr.mxu0 0.0
        %542 = vmatpush1.msra.mxu0 0.0
        %543 = vmatprep.subr.mxu0 0.0
        %544 = vmatpush1.msra.mxu0 0.0
        %545 = vmatprep.subr.mxu0 0.0
        %546 = vmatpush1.msra.mxu0 0.0
        %547 = vmatprep.subr.mxu0 0.0
        %548 = vmatpush1.msra.mxu0 0.0
        %549 = vmatprep.subr.mxu0 0.0
        %550 = vmatpush1.msra.mxu0 0.0
        %551 = vmatprep.subr.mxu0 0.0
        %552 = vmatpush1.msra.mxu0 0.0
        %553 = vmatprep.subr.mxu0 0.0
        %554 = vmatpush1.msra.mxu0 0.0
        %555 = vmatprep.subr.mxu0 0.0
        %556 = vmatpush1.msra.mxu0 0.0
        %557 = vmatprep.subr.mxu0 0.0
        %558 = vmatpush1.msra.mxu0 0.0
        %559 = vmatprep.subr.mxu0 0.0
        %560 = vmatpush1.msra.mxu0 0.0
        %561 = vmatprep.subr.mxu0 0.0
        %562 = vmatpush1.msra.mxu0 0.0
        %563 = vmatprep.subr.mxu0 0.0
        %564 = vmatpush1.msra.mxu0 0.0
        %565 = vmatprep.mubr.f32.mxu0 0.0
        %566 = vmatmul.mubr.f32.gmra.mrb[0].mxu0 %v499
        %v567 = vpop.f32.mrb[0].mxu0
        %v568 = vadd.f32 0.0, %v567
        %v569 = vpop.f32.mrb[0].mxu0
        %570 = vdwg.mxu0
        %v571 = vadd.f32 %v497, %v568
        %572 = vst.msk [vmem:[#allocation4] sm:$0xff] %vm380, %v571
        %573 = vst.msk [vmem:[#allocation2] sm:$0xff] %vm489, %v471
      $region48: #{isotropic_forward.7} parent=35 // pred_fallthru
        _
      // Predicated region
      $region49: #{isotropic_forward.7} parent=35 // pred_check
        %p574 = pneg %p353
      $region50: #{isotropic_forward.7} parent=35 // pred_check_branch
        %576 = sbr.rel (%p574) target = $region52
      $region51: #{isotropic_forward.7} parent=35 // pred_region
        %v577 = vld [vmem:[#allocation4] sm:$0xff]
        %v578 = vld [vmem:[#allocation3] sm:$0xff]
        %v579 = vrcp.pop %v578
        %581 = vset.pattern.permute.xlu0 0
        %582 = vperm.xlu0 %581, %v579
        %v583 = vpop.permute.xlu0 %582
        %v585 = vmul.f32 %v577, %v583
        %v586 = vld [vmem:[#allocation5] sm:$0xff]
        %v587 = vld [vmem:[%s345] sm:$0xff]
        %vm588 = vcmask 64512
        %v590 = vsel %vm588, %v585, 0
        %592 = vmatprep.subr.mxu0 0.0
        %593 = vmatpush1.msra.mxu0 %v587
        %594 = vmatprep.subr.mxu0 0.0
        %595 = vmatpush1.msra.mxu0 0.0
        %596 = vmatprep.subr.mxu0 0.0
        %597 = vmatpush1.msra.mxu0 0.0
        %598 = vmatprep.subr.mxu0 0.0
        %599 = vmatpush1.msra.mxu0 0.0
        %600 = vmatprep.subr.mxu0 0.0
        %601 = vmatpush1.msra.mxu0 0.0
        %602 = vmatprep.subr.mxu0 0.0
        %603 = vmatpush1.msra.mxu0 0.0
        %604 = vmatprep.subr.mxu0 0.0
        %605 = vmatpush1.msra.mxu0 0.0
        %606 = vmatprep.subr.mxu0 0.0
        %607 = vmatpush1.msra.mxu0 0.0
        %608 = vmatprep.subr.mxu0 0.0
        %609 = vmatpush1.msra.mxu0 0.0
        %610 = vmatprep.subr.mxu0 0.0
        %611 = vmatpush1.msra.mxu0 0.0
        %612 = vmatprep.subr.mxu0 0.0
        %613 = vmatpush1.msra.mxu0 0.0
        %614 = vmatprep.subr.mxu0 0.0
        %615 = vmatpush1.msra.mxu0 0.0
        %616 = vmatprep.subr.mxu0 0.0
        %617 = vmatpush1.msra.mxu0 0.0
        %618 = vmatprep.subr.mxu0 0.0
        %619 = vmatpush1.msra.mxu0 0.0
        %620 = vmatprep.subr.mxu0 0.0
        %621 = vmatpush1.msra.mxu0 0.0
        %622 = vmatprep.subr.mxu0 0.0
        %623 = vmatpush1.msra.mxu0 0.0
        %624 = vmatprep.subr.mxu0 0.0
        %625 = vmatpush1.msra.mxu0 0.0
        %626 = vmatprep.subr.mxu0 0.0
        %627 = vmatpush1.msra.mxu0 0.0
        %628 = vmatprep.subr.mxu0 0.0
        %629 = vmatpush1.msra.mxu0 0.0
        %630 = vmatprep.subr.mxu0 0.0
        %631 = vmatpush1.msra.mxu0 0.0
        %632 = vmatprep.subr.mxu0 0.0
        %633 = vmatpush1.msra.mxu0 0.0
        %634 = vmatprep.subr.mxu0 0.0
        %635 = vmatpush1.msra.mxu0 0.0
        %636 = vmatprep.subr.mxu0 0.0
        %637 = vmatpush1.msra.mxu0 0.0
        %638 = vmatprep.subr.mxu0 0.0
        %639 = vmatpush1.msra.mxu0 0.0
        %640 = vmatprep.subr.mxu0 0.0
        %641 = vmatpush1.msra.mxu0 0.0
        %642 = vmatprep.subr.mxu0 0.0
        %643 = vmatpush1.msra.mxu0 0.0
        %644 = vmatprep.subr.mxu0 0.0
        %645 = vmatpush1.msra.mxu0 0.0
        %646 = vmatprep.subr.mxu0 0.0
        %647 = vmatpush1.msra.mxu0 0.0
        %648 = vmatprep.subr.mxu0 0.0
        %649 = vmatpush1.msra.mxu0 0.0
        %650 = vmatprep.subr.mxu0 0.0
        %651 = vmatpush1.msra.mxu0 0.0
        %652 = vmatprep.subr.mxu0 0.0
        %653 = vmatpush1.msra.mxu0 0.0
        %654 = vmatprep.subr.mxu0 0.0
        %655 = vmatpush1.msra.mxu0 0.0
        %656 = vmatprep.mubr.f32.mxu0 0.0
        %657 = vmatmul.mubr.f32.gmra.mrb[0].mxu0 %v590
        %v658 = vpop.f32.mrb[0].mxu0
        %v659 = vadd.f32 0.0, %v658
        %v660 = vpop.f32.mrb[0].mxu0
        %661 = vdwg.mxu0
        %v662 = vadd.f32 %v586, %v659
        %vm663 = vcmask 261120
        %664 = vst.msk [vmem:[#allocation5] sm:$0xff] %vm663, %v662
      $region52: #{isotropic_forward.7} parent=35 // pred_fallthru
        _
      %p665 = scmp.eq.s32.totalorder %s23, 3
      %p666 = pnand %p353, %p665
      %p667 = pneg %p666
      // Predicated region
      $region53: #{isotropic_forward.7} parent=35 // pred_check
        _
      $region54: #{isotropic_forward.7} parent=35 // pred_check_branch
        %669 = sbr.rel (%p666) target = $region56
      $region55: #{isotropic_forward.7} parent=35 // pred_region
        %v670 = vld [vmem:[#allocation5] sm:$0xff]
        %vm671 = vcmask 261120
        %672 = vst.msk [vmem:[%s352] sm:$0xff] %vm671, %v670
      $region56: #{isotropic_forward.7} parent=35 // pred_fallthru
        _
      %p673 = scmp.lt.s32.totalorder %s21, 1
      %s674 = scalar_select %p673, %s21, 1
      %p675 = scmp.lt.s32.totalorder %s22, 0
      %s676 = scalar_select %p675, %s22, 0
      %s677 = sadd.s32 %s676, %s674
      %s678 = smul.addr %s677, 8
      %s679 = scalar_lea.vmem %s4, %s678
      // Predicated region
      $region57: #{isotropic_forward.7} parent=35 // pred_check
        %p680 = pneg %p177
      $region58: #{isotropic_forward.7} parent=35 // pred_check_branch
        %682 = sbr.rel (%p680) target = $region60
      $region59: #{isotropic_forward.7} parent=35 // pred_region
        _
      $region60: #{isotropic_forward.7} parent=35 // pred_fallthru
        _
    $region36: #{isotropic_forward.7} parent=5 // pred_fallthru
      _
    %p683 = scmp.le.s32.totalorder 2, %s10
    // Predicated region
    $region61: #{isotropic_forward.7} parent=5 // pred_check
      %p684 = pneg %p683
    $region62: #{isotropic_forward.7} parent=5 // pred_check_branch
      %686 = sbr.rel (%p684) target = $region64
    $region63: #{isotropic_forward.7} parent=5 // pred_region
      %s687 = ssub.s32 %s10, 2
      // Predicated region
      $region65: #{isotropic_forward.7} parent=63 // pred_check
        %p688 = pneg %p183
      $region66: #{isotropic_forward.7} parent=63 // pred_check_branch
        %690 = sbr.rel (%p688) target = $region68
      $region67: #{isotropic_forward.7} parent=63 // pred_region
        %p691 = scmp.lt.s32.totalorder %s25, 1
        %s692 = scalar_select %p691, %s25, 1
        %p693 = scmp.lt.s32.totalorder %s26, 0
        %s694 = scalar_select %p693, %s26, 0
        %s695 = sadd.s32 %s694, %s692
        %s696 = smul.addr %s695, 8
        %s697 = scalar_lea.vmem %s4, %s696
      $region68: #{isotropic_forward.7} parent=63 // pred_fallthru
        _
    $region64: #{isotropic_forward.7} parent=5 // pred_fallthru
      _
  $region6: #{isotropic_forward.7} parent=0 // loop_footer
    %s14 = sadd.s32 1, %s10
  $region7: #{isotropic_forward.7} parent=0 // loop_footer_branch
    %9 = sbr.rel target = $region3
  $region8: #{isotropic_forward.7} parent=0 // loop_exit
    _

// kernel: isotropic_forward.6
$region0: #{isotropic_forward.6}
  #allocation0 [shape = 'u32[]', space=smem, size = 0x4, offset = 0x4, fixed_abs, tag = 'smem constant byte address 0x4 - core index']
  #allocation1 [shape = 'u32[144,128]{1,0:T(1,128)}', space=vmem, size = 0x12000, scoped, tag = 'internal scratch']
  #allocation2 [shape = 'f32[16,32]{1,0:T(8,128)}', space=vmem, size = 0x2000, scoped, tag = 'scratch operand']
  %s0 = inlined_call_operand.vmem [shape: f32[16,32], index: 0, kind: input, shape index: {}]
  %s1 = inlined_call_operand.vmem [shape: f32[1,32], index: 1, kind: input, shape index: {}]
  %s2 = inlined_call_operand.vmem [shape: f32[32,96], index: 2, kind: input, shape index: {}]
  %s3 = inlined_call_operand.vmem [shape: f32[16,96], index: 3, kind: output, shape index: {0}]
  %s4 = inlined_call_operand.vmem [shape: f32[16,32], index: 4, kind: output, shape index: {1}]
  %5 = xla_tuple %s3, %s4
  %s6 = sld [smem:[#allocation0]]
  $region34: #{isotropic_forward.6} parent=0
    _
  %s8 = ssub.s32 1, %s6
  %s9 = scalar_select 0, %s8, %s6
  // Predicated region
  $region2: #{isotropic_forward.6} parent=0 // pred_check
    _
  $region3: #{isotropic_forward.6} parent=0 // pred_check_branch
    %11 = sbr.rel (0) target = $region5
  $region4: #{isotropic_forward.6} parent=0 // pred_region
    _
  $region5: #{isotropic_forward.6} parent=0 // pred_fallthru
    _
  // Predicated region
  $region6: #{isotropic_forward.6} parent=0 // pred_check
    _
  $region7: #{isotropic_forward.6} parent=0 // pred_check_branch
    %13 = sbr.rel (0) target = $region9
  $region8: #{isotropic_forward.6} parent=0 // pred_region
    _
  $region9: #{isotropic_forward.6} parent=0 // pred_fallthru
    _
  // Predicated region
  $region10: #{isotropic_forward.6} parent=0 // pred_check
    _
  $region11: #{isotropic_forward.6} parent=0 // pred_check_branch
    %15 = sbr.rel (0) target = $region13
  $region12: #{isotropic_forward.6} parent=0 // pred_region
    _
  $region13: #{isotropic_forward.6} parent=0 // pred_fallthru
    _
  %p16 = scmp.eq.s32.totalorder 0, 0
  // Predicated region
  $region14: #{isotropic_forward.6} parent=0 // pred_check
    %p17 = pneg %p16
  $region15: #{isotropic_forward.6} parent=0 // pred_check_branch
    %19 = sbr.rel (%p17) target = $region17
  $region16: #{isotropic_forward.6} parent=0 // pred_region
    %v20 = vld [vmem:[%s0] sm:$0xff]
    %v21 = vld [vmem:[%s0 + $0x8] sm:$0xff]
    %vm22 = vcmask 261120
    %23 = vst.msk [vmem:[%s4] sm:$0xff] %vm22, %v20
    %24 = vst.msk [vmem:[%s4 + $0x8] sm:$0xff] %vm22, %v21
    %v25 = vmul.f32 %v20, %v20
    %v26 = vmul.f32 %v21, %v21
    %v27 = vsel %vm22, %v25, 0.0
    %28 = vadd.xlane.f32.xlu0 %v27
    %v29 = vpop.xlane.xlu0 %28
    %v30 = vsel %vm22, %v26, 0.0
    %31 = vadd.xlane.f32.xlu0 %v30
    %v32 = vpop.xlane.xlu0 %31
    %v33 = vrcp.pop 32.0
    %v34 = vmul.f32 %v29, %v33
    %v35 = vmul.f32 %v32, %v33
    %v36 = vadd.f32 %v34, 1e-05
    %v37 = vadd.f32 %v35, 1e-05
    %v38 = vrsqrt.pop %v36
    %v39 = vrsqrt.pop %v37
    %v40 = vmul.f32 %v20, %v38
    %v41 = vmul.f32 %v21, %v39
    %v42 = vld [vmem:[%s1] sm:$0x1]
    %v44 = vlaneseq
    %v45 = vshrl.u32 %v44, 7
    %v46 = vsub.s32 0, %v45
    %v47 = vrot.slane %v42, %v46
    %v49 = vmul.f32 %v40, %v47
    %v50 = vmul.f32 %v41, %v47
    %51 = vst.msk [vmem:[#allocation2] sm:$0xff] %vm22, %v49
    %52 = vst.msk [vmem:[#allocation2 + $0x8] sm:$0xff] %vm22, %v50
  $region17: #{isotropic_forward.6} parent=0 // pred_fallthru
    _
  %v53 = vld [vmem:[#allocation2] sm:$0xff]
  %v54 = vld [vmem:[#allocation2 + $0x8] sm:$0xff]
  %v55 = vld [vmem:[%s2] sm:$0xff]
  %v56 = vld [vmem:[%s2 + $0x8] sm:$0xff]
  %v57 = vld [vmem:[%s2 + $0x10] sm:$0xff]
  %v58 = vld [vmem:[%s2 + $0x18] sm:$0xff]
  %vm59 = vcmask 261120
  %v61 = vsel %vm59, %v53, 0
  %v64 = vsel %vm59, %v54, 0
  %66 = vmatprep.subr.mxu0 0.0
  %67 = vmatpush1.msra.mxu0 %v55
  %68 = vmatprep.subr.mxu0 0.0
  %69 = vmatpush1.msra.mxu0 %v56
  %70 = vmatprep.subr.mxu0 0.0
  %71 = vmatpush1.msra.mxu0 %v57
  %72 = vmatprep.subr.mxu0 0.0
  %73 = vmatpush1.msra.mxu0 %v58
  %74 = vmatprep.subr.mxu0 0.0
  %75 = vmatpush1.msra.mxu0 0.0
  %76 = vmatprep.subr.mxu0 0.0
  %77 = vmatpush1.msra.mxu0 0.0
  %78 = vmatprep.subr.mxu0 0.0
  %79 = vmatpush1.msra.mxu0 0.0
  %80 = vmatprep.subr.mxu0 0.0
  %81 = vmatpush1.msra.mxu0 0.0
  %82 = vmatprep.subr.mxu0 0.0
  %83 = vmatpush1.msra.mxu0 0.0
  %84 = vmatprep.subr.mxu0 0.0
  %85 = vmatpush1.msra.mxu0 0.0
  %86 = vmatprep.subr.mxu0 0.0
  %87 = vmatpush1.msra.mxu0 0.0
  %88 = vmatprep.subr.mxu0 0.0
  %89 = vmatpush1.msra.mxu0 0.0
  %90 = vmatprep.subr.mxu0 0.0
  %91 = vmatpush1.msra.mxu0 0.0
  %92 = vmatprep.subr.mxu0 0.0
  %93 = vmatpush1.msra.mxu0 0.0
  %94 = vmatprep.subr.mxu0 0.0
  %95 = vmatpush1.msra.mxu0 0.0
  %96 = vmatprep.subr.mxu0 0.0
  %97 = vmatpush1.msra.mxu0 0.0
  %98 = vmatprep.subr.mxu0 0.0
  %99 = vmatpush1.msra.mxu0 0.0
  %100 = vmatprep.subr.mxu0 0.0
  %101 = vmatpush1.msra.mxu0 0.0
  %102 = vmatprep.subr.mxu0 0.0
  %103 = vmatpush1.msra.mxu0 0.0
  %104 = vmatprep.subr.mxu0 0.0
  %105 = vmatpush1.msra.mxu0 0.0
  %106 = vmatprep.subr.mxu0 0.0
  %107 = vmatpush1.msra.mxu0 0.0
  %108 = vmatprep.subr.mxu0 0.0
  %109 = vmatpush1.msra.mxu0 0.0
  %110 = vmatprep.subr.mxu0 0.0
  %111 = vmatpush1.msra.mxu0 0.0
  %112 = vmatprep.subr.mxu0 0.0
  %113 = vmatpush1.msra.mxu0 0.0
  %114 = vmatprep.subr.mxu0 0.0
  %115 = vmatpush1.msra.mxu0 0.0
  %116 = vmatprep.subr.mxu0 0.0
  %117 = vmatpush1.msra.mxu0 0.0
  %118 = vmatprep.subr.mxu0 0.0
  %119 = vmatpush1.msra.mxu0 0.0
  %120 = vmatprep.subr.mxu0 0.0
  %121 = vmatpush1.msra.mxu0 0.0
  %122 = vmatprep.subr.mxu0 0.0
  %123 = vmatpush1.msra.mxu0 0.0
  %124 = vmatprep.subr.mxu0 0.0
  %125 = vmatpush1.msra.mxu0 0.0
  %126 = vmatprep.subr.mxu0 0.0
  %127 = vmatpush1.msra.mxu0 0.0
  %128 = vmatprep.subr.mxu0 0.0
  %129 = vmatpush1.msra.mxu0 0.0
  %130 = vmatprep.mubr.f32.mxu0 0.0
  %131 = vmatmul.mubr.f32.gmra.mrb[0].mxu0 %v61
  %v132 = vpop.f32.mrb[0].mxu0
  %v133 = vadd.f32 0.0, %v132
  %v134 = vpop.f32.mrb[0].mxu0
  %135 = vmatprep.mubr.f32.mxu0 0.0
  %136 = vmatmul.mubr.f32.gmra.mrb[0].mxu0 %v64
  %v137 = vpop.f32.mrb[0].mxu0
  %v138 = vadd.f32 0.0, %v137
  %v139 = vpop.f32.mrb[0].mxu0
  %140 = vdwg.mxu0
  %vm141 = vcmask 785408
  %142 = vst.msk [vmem:[%s3] sm:$0xff] %vm141, %v133
  %143 = vst.msk [vmem:[%s3 + $0x8] sm:$0xff] %vm141, %v138
  // Predicated region
  $region18: #{isotropic_forward.6} parent=0 // pred_check
    _
  $region19: #{isotropic_forward.6} parent=0 // pred_check_branch
    %145 = sbr.rel (0) target = $region21
  $region20: #{isotropic_forward.6} parent=0 // pred_region
    _
  $region21: #{isotropic_forward.6} parent=0 // pred_fallthru
    _
  // Predicated region
  $region22: #{isotropic_forward.6} parent=0 // pred_check
    _
  $region23: #{isotropic_forward.6} parent=0 // pred_check_branch
    %147 = sbr.rel (0) target = $region25
  $region24: #{isotropic_forward.6} parent=0 // pred_region
    _
  $region25: #{isotropic_forward.6} parent=0 // pred_fallthru
    _
  // Predicated region
  $region26: #{isotropic_forward.6} parent=0 // pred_check
    _
  $region27: #{isotropic_forward.6} parent=0 // pred_check_branch
    %149 = sbr.rel (0) target = $region29
  $region28: #{isotropic_forward.6} parent=0 // pred_region
    _
  $region29: #{isotropic_forward.6} parent=0 // pred_fallthru
    _
  // Predicated region
  $region30: #{isotropic_forward.6} parent=0 // pred_check
    _
  $region31: #{isotropic_forward.6} parent=0 // pred_check_branch
    %151 = sbr.rel (0) target = $region33
  $region32: #{isotropic_forward.6} parent=0 // pred_region
    _
  $region33: #{isotropic_forward.6} parent=0 // pred_fallthru
    _

// kernel: isotropic_forward.8
$region0: #{isotropic_forward.8}
  #allocation0 [shape = 'u32[]', space=smem, size = 0x4, offset = 0x4, fixed_abs, tag = 'smem constant byte address 0x4 - core index']
  #allocation1 [shape = 'u32[144,128]{1,0:T(1,128)}', space=vmem, size = 0x12000, scoped, tag = 'internal scratch']
  #allocation2 [shape = 'f32[16,32]{1,0:T(8,128)}', space=vmem, size = 0x2000, scoped, tag = 'scratch operand']
  %s0 = inlined_call_operand.vmem [shape: f32[16,32], index: 0, kind: input, shape index: {}]
  %s1 = inlined_call_operand.vmem [shape: f32[16,32], index: 1, kind: input, shape index: {}, may-alias: {1,5}]
  %s2 = inlined_call_operand.vmem [shape: f32[1,32], index: 2, kind: input, shape index: {}]
  %s3 = inlined_call_operand.vmem [shape: f32[32,96], index: 3, kind: input, shape index: {}]
  %s4 = inlined_call_operand.vmem [shape: f32[16,96], index: 4, kind: output, shape index: {0}]
  %s5 = inlined_call_operand.vmem [shape: f32[16,32], index: 5, kind: output, shape index: {1}, may-alias: {1,5}]
  %6 = xla_tuple %s4, %s5
  %s7 = sld [smem:[#allocation0]]
  $region38: #{isotropic_forward.8} parent=0
    _
  %s9 = ssub.s32 1, %s7
  %s10 = scalar_select 0, %s9, %s7
  // Predicated region
  $region2: #{isotropic_forward.8} parent=0 // pred_check
    _
  $region3: #{isotropic_forward.8} parent=0 // pred_check_branch
    %12 = sbr.rel (0) target = $region5
  $region4: #{isotropic_forward.8} parent=0 // pred_region
    _
  $region5: #{isotropic_forward.8} parent=0 // pred_fallthru
    _
  // Predicated region
  $region6: #{isotropic_forward.8} parent=0 // pred_check
    _
  $region7: #{isotropic_forward.8} parent=0 // pred_check_branch
    %14 = sbr.rel (0) target = $region9
  $region8: #{isotropic_forward.8} parent=0 // pred_region
    _
  $region9: #{isotropic_forward.8} parent=0 // pred_fallthru
    _
  // Predicated region
  $region10: #{isotropic_forward.8} parent=0 // pred_check
    _
  $region11: #{isotropic_forward.8} parent=0 // pred_check_branch
    %16 = sbr.rel (0) target = $region13
  $region12: #{isotropic_forward.8} parent=0 // pred_region
    _
  $region13: #{isotropic_forward.8} parent=0 // pred_fallthru
    _
  // Predicated region
  $region14: #{isotropic_forward.8} parent=0 // pred_check
    _
  $region15: #{isotropic_forward.8} parent=0 // pred_check_branch
    %18 = sbr.rel (0) target = $region17
  $region16: #{isotropic_forward.8} parent=0 // pred_region
    _
  $region17: #{isotropic_forward.8} parent=0 // pred_fallthru
    _
  %p19 = scmp.eq.s32.totalorder 0, 0
  // Predicated region
  $region18: #{isotropic_forward.8} parent=0 // pred_check
    %p20 = pneg %p19
  $region19: #{isotropic_forward.8} parent=0 // pred_check_branch
    %22 = sbr.rel (%p20) target = $region21
  $region20: #{isotropic_forward.8} parent=0 // pred_region
    %v23 = vld [vmem:[%s0] sm:$0xff]
    %v24 = vld [vmem:[%s0 + $0x8] sm:$0xff]
    %v25 = vld [vmem:[%s1] sm:$0xff]
    %v26 = vld [vmem:[%s1 + $0x8] sm:$0xff]
    %v27 = vadd.f32 %v23, %v25
    %v28 = vadd.f32 %v24, %v26
    %vm29 = vcmask 261120
    %30 = vst.msk [vmem:[%s5] sm:$0xff] %vm29, %v27
    %31 = vst.msk [vmem:[%s5 + $0x8] sm:$0xff] %vm29, %v28
    %v32 = vmul.f32 %v27, %v27
    %v33 = vmul.f32 %v28, %v28
    %v34 = vsel %vm29, %v32, 0.0
    %35 = vadd.xlane.f32.xlu0 %v34
    %v36 = vpop.xlane.xlu0 %35
    %v37 = vsel %vm29, %v33, 0.0
    %38 = vadd.xlane.f32.xlu0 %v37
    %v39 = vpop.xlane.xlu0 %38
    %v40 = vrcp.pop 32.0
    %v41 = vmul.f32 %v36, %v40
    %v42 = vmul.f32 %v39, %v40
    %v43 = vadd.f32 %v41, 1e-05
    %v44 = vadd.f32 %v42, 1e-05
    %v45 = vrsqrt.pop %v43
    %v46 = vrsqrt.pop %v44
    %v47 = vmul.f32 %v27, %v45
    %v48 = vmul.f32 %v28, %v46
    %v49 = vld [vmem:[%s2] sm:$0x1]
    %v51 = vlaneseq
    %v52 = vshrl.u32 %v51, 7
    %v53 = vsub.s32 0, %v52
    %v54 = vrot.slane %v49, %v53
    %v56 = vmul.f32 %v47, %v54
    %v57 = vmul.f32 %v48, %v54
    %58 = vst.msk [vmem:[#allocation2] sm:$0xff] %vm29, %v56
    %59 = vst.msk [vmem:[#allocation2 + $0x8] sm:$0xff] %vm29, %v57
  $region21: #{isotropic_forward.8} parent=0 // pred_fallthru
    _
  %v60 = vld [vmem:[#allocation2] sm:$0xff]
  %v61 = vld [vmem:[#allocation2 + $0x8] sm:$0xff]
  %v62 = vld [vmem:[%s3] sm:$0xff]
  %v63 = vld [vmem:[%s3 + $0x8] sm:$0xff]
  %v64 = vld [vmem:[%s3 + $0x10] sm:$0xff]
  %v65 = vld [vmem:[%s3 + $0x18] sm:$0xff]
  %vm66 = vcmask 261120
  %v68 = vsel %vm66, %v60, 0
  %v71 = vsel %vm66, %v61, 0
  %73 = vmatprep.subr.mxu0 0.0
  %74 = vmatpush1.msra.mxu0 %v62
  %75 = vmatprep.subr.mxu0 0.0
  %76 = vmatpush1.msra.mxu0 %v63
  %77 = vmatprep.subr.mxu0 0.0
  %78 = vmatpush1.msra.mxu0 %v64
  %79 = vmatprep.subr.mxu0 0.0
  %80 = vmatpush1.msra.mxu0 %v65
  %81 = vmatprep.subr.mxu0 0.0
  %82 = vmatpush1.msra.mxu0 0.0
  %83 = vmatprep.subr.mxu0 0.0
  %84 = vmatpush1.msra.mxu0 0.0
  %85 = vmatprep.subr.mxu0 0.0
  %86 = vmatpush1.msra.mxu0 0.0
  %87 = vmatprep.subr.mxu0 0.0
  %88 = vmatpush1.msra.mxu0 0.0
  %89 = vmatprep.subr.mxu0 0.0
  %90 = vmatpush1.msra.mxu0 0.0
  %91 = vmatprep.subr.mxu0 0.0
  %92 = vmatpush1.msra.mxu0 0.0
  %93 = vmatprep.subr.mxu0 0.0
  %94 = vmatpush1.msra.mxu0 0.0
  %95 = vmatprep.subr.mxu0 0.0
  %96 = vmatpush1.msra.mxu0 0.0
  %97 = vmatprep.subr.mxu0 0.0
  %98 = vmatpush1.msra.mxu0 0.0
  %99 = vmatprep.subr.mxu0 0.0
  %100 = vmatpush1.msra.mxu0 0.0
  %101 = vmatprep.subr.mxu0 0.0
  %102 = vmatpush1.msra.mxu0 0.0
  %103 = vmatprep.subr.mxu0 0.0
  %104 = vmatpush1.msra.mxu0 0.0
  %105 = vmatprep.subr.mxu0 0.0
  %106 = vmatpush1.msra.mxu0 0.0
  %107 = vmatprep.subr.mxu0 0.0
  %108 = vmatpush1.msra.mxu0 0.0
  %109 = vmatprep.subr.mxu0 0.0
  %110 = vmatpush1.msra.mxu0 0.0
  %111 = vmatprep.subr.mxu0 0.0
  %112 = vmatpush1.msra.mxu0 0.0
  %113 = vmatprep.subr.mxu0 0.0
  %114 = vmatpush1.msra.mxu0 0.0
  %115 = vmatprep.subr.mxu0 0.0
  %116 = vmatpush1.msra.mxu0 0.0
  %117 = vmatprep.subr.mxu0 0.0
  %118 = vmatpush1.msra.mxu0 0.0
  %119 = vmatprep.subr.mxu0 0.0
  %120 = vmatpush1.msra.mxu0 0.0
  %121 = vmatprep.subr.mxu0 0.0
  %122 = vmatpush1.msra.mxu0 0.0
  %123 = vmatprep.subr.mxu0 0.0
  %124 = vmatpush1.msra.mxu0 0.0
  %125 = vmatprep.subr.mxu0 0.0
  %126 = vmatpush1.msra.mxu0 0.0
  %127 = vmatprep.subr.mxu0 0.0
  %128 = vmatpush1.msra.mxu0 0.0
  %129 = vmatprep.subr.mxu0 0.0
  %130 = vmatpush1.msra.mxu0 0.0
  %131 = vmatprep.subr.mxu0 0.0
  %132 = vmatpush1.msra.mxu0 0.0
  %133 = vmatprep.subr.mxu0 0.0
  %134 = vmatpush1.msra.mxu0 0.0
  %135 = vmatprep.subr.mxu0 0.0
  %136 = vmatpush1.msra.mxu0 0.0
  %137 = vmatprep.mubr.f32.mxu0 0.0
  %138 = vmatmul.mubr.f32.gmra.mrb[0].mxu0 %v68
  %v139 = vpop.f32.mrb[0].mxu0
  %v140 = vadd.f32 0.0, %v139
  %v141 = vpop.f32.mrb[0].mxu0
  %142 = vmatprep.mubr.f32.mxu0 0.0
  %143 = vmatmul.mubr.f32.gmra.mrb[0].mxu0 %v71
  %v144 = vpop.f32.mrb[0].mxu0
  %v145 = vadd.f32 0.0, %v144
  %v146 = vpop.f32.mrb[0].mxu0
  %147 = vdwg.mxu0
  %vm148 = vcmask 785408
  %149 = vst.msk [vmem:[%s4] sm:$0xff] %vm148, %v140
  %150 = vst.msk [vmem:[%s4 + $0x8] sm:$0xff] %vm148, %v145
  // Predicated region
  $region22: #{isotropic_forward.8} parent=0 // pred_check
    _
  $region23: #{isotropic_forward.8} parent=0 // pred_check_branch
    %152 = sbr.rel (0) target = $region25
  $region24: #{isotropic_forward.8} parent=0 // pred_region
    _
  $region25: #{isotropic_forward.8} parent=0 // pred_fallthru
    _
  // Predicated region
  $region26: #{isotropic_forward.8} parent=0 // pred_check
    _
  $region27: #{isotropic_forward.8} parent=0 // pred_check_branch
    %154 = sbr.rel (0) target = $region29
  $region28: #{isotropic_forward.8} parent=0 // pred_region
    _
  $region29: #{isotropic_forward.8} parent=0 // pred_fallthru
    _
  // Predicated region
  $region30: #{isotropic_forward.8} parent=0 // pred_check
    _
  $region31: #{isotropic_forward.8} parent=0 // pred_check_branch
    %156 = sbr.rel (0) target = $region33
  $region32: #{isotropic_forward.8} parent=0 // pred_region
    _
  $region33: #{isotropic_forward.8} parent=0 // pred_fallthru
    _
  // Predicated region
  $region34: #{isotropic_forward.8} parent=0 // pred_check
    _
  $region35: #{isotropic_forward.8} parent=0 // pred_check_branch
    %158 = sbr.rel (0) target = $region37
  $region36: #{isotropic_forward.8} parent=0 // pred_region
    _
  $region37: #{isotropic_forward.8} parent=0 // pred_fallthru
    _

// kernel: isotropic_forward.11
$region0: #{isotropic_forward.11}
  #allocation0 [shape = 'u32[]', space=smem, size = 0x4, offset = 0x4, fixed_abs, tag = 'smem constant byte address 0x4 - core index']
  #allocation1 [shape = 'u32[144,128]{1,0:T(1,128)}', space=vmem, size = 0x12000, scoped, tag = 'internal scratch']
  %s0 = inlined_call_operand.vmem [shape: f32[16,32], index: 0, kind: input, shape index: {}]
  %s1 = inlined_call_operand.vmem [shape: f32[16,32], index: 1, kind: input, shape index: {}]
  %s2 = inlined_call_operand.vmem [shape: f32[1,32], index: 2, kind: input, shape index: {}]
  %s3 = inlined_call_operand.hbm [shape: f32[16,32], index: 3, kind: output, shape index: {}]
  %s4 = sld [smem:[#allocation0]]
  $region22: #{isotropic_forward.11} parent=0
    _
  %s6 = ssub.s32 1, %s4
  %s7 = scalar_select 0, %s6, %s4
  $region1: #{isotropic_forward.11} parent=0
    #allocation2 [shape = 'u8[8192]{0}', space=vmem, size = 0x2000, scoped, tag = 'output window, operand 0, single buffered']
    #allocation3 [shape = 's32[1]{0}', space=sflag, size = 0x4, scoped, tag = 'scoped memory for isotropic_forward.11']
    %8 = vsyncpa [#allocation3], 0
    // Predicated region
    $region2: #{isotropic_forward.11} parent=1 // pred_check
      _
    $region3: #{isotropic_forward.11} parent=1 // pred_check_branch
      %10 = sbr.rel (0) target = $region5
    $region4: #{isotropic_forward.11} parent=1 // pred_region
      _
    $region5: #{isotropic_forward.11} parent=1 // pred_fallthru
      _
    // Predicated region
    $region6: #{isotropic_forward.11} parent=1 // pred_check
      _
    $region7: #{isotropic_forward.11} parent=1 // pred_check_branch
      %12 = sbr.rel (0) target = $region9
    $region8: #{isotropic_forward.11} parent=1 // pred_region
      _
    $region9: #{isotropic_forward.11} parent=1 // pred_fallthru
      _
    // Predicated region
    $region10: #{isotropic_forward.11} parent=1 // pred_check
      _
    $region11: #{isotropic_forward.11} parent=1 // pred_check_branch
      %14 = sbr.rel (0) target = $region13
    $region12: #{isotropic_forward.11} parent=1 // pred_region
      _
    $region13: #{isotropic_forward.11} parent=1 // pred_fallthru
      _
    %v15 = vld [vmem:[%s0] sm:$0xff]
    %v16 = vld [vmem:[%s0 + $0x8] sm:$0xff]
    %v17 = vld [vmem:[%s1] sm:$0xff]
    %v18 = vld [vmem:[%s1 + $0x8] sm:$0xff]
    %v19 = vadd.f32 %v15, %v17
    %v20 = vadd.f32 %v16, %v18
    %v21 = vmul.f32 %v19, %v19
    %v22 = vmul.f32 %v20, %v20
    %vm23 = vcmask 261120
    %v24 = vsel %vm23, %v21, 0.0
    %25 = vadd.xlane.f32.xlu0 %v24
    %v26 = vpop.xlane.xlu0 %25
    %v27 = vsel %vm23, %v22, 0.0
    %28 = vadd.xlane.f32.xlu0 %v27
    %v29 = vpop.xlane.xlu0 %28
    %v30 = vrcp.pop 32.0
    %v31 = vmul.f32 %v26, %v30
    %v32 = vmul.f32 %v29, %v30
    %v33 = vadd.f32 %v31, 1e-05
    %v34 = vadd.f32 %v32, 1e-05
    %v35 = vrsqrt.pop %v33
    %v36 = vrsqrt.pop %v34
    %v37 = vmul.f32 %v19, %v35
    %v38 = vmul.f32 %v20, %v36
    %v39 = vld [vmem:[%s2] sm:$0x1]
    %v41 = vlaneseq
    %v42 = vshrl.u32 %v41, 7
    %v43 = vsub.s32 0, %v42
    %v44 = vrot.slane %v39, %v43
    %v46 = vmul.f32 %v37, %v44
    %v47 = vmul.f32 %v38, %v44
    %48 = vst.msk [vmem:[#allocation2] sm:$0xff] %vm23, %v46
    %49 = vst.msk [vmem:[#allocation2 + $0x8] sm:$0xff] %vm23, %v47
    // Predicated region
    $region14: #{isotropic_forward.11} parent=1 // pred_check
      _
    $region15: #{isotropic_forward.11} parent=1 // pred_check_branch
      %51 = sbr.rel (0) target = $region17
    $region16: #{isotropic_forward.11} parent=1 // pred_region
      %s53 = ssub.s32 256, 256
      %54 = vsyncadd [#allocation3], %s53
      %s55 = sshll.u32 [#allocation2], 4
      %s56 = int_to_ptr.vmem [resolvable:$true] %s55
      %61 = dma.vmem_to_hbm [thread:$0]  %s56, 256, %s3, [#allocation3], 128, 128, 8
    $region17: #{isotropic_forward.11} parent=1 // pred_fallthru
      _
    // Predicated region
    $region18: #{isotropic_forward.11} parent=1 // pred_check
      _
    $region19: #{isotropic_forward.11} parent=1 // pred_check_branch
      %63 = sbr.rel (0) target = $region21
    $region20: #{isotropic_forward.11} parent=1 // pred_region
      %64 = dma.done [#allocation3], 256
    $region21: #{isotropic_forward.11} parent=1 // pred_fallthru
      _
    %65 = vsyncpa [#allocation3], 1

</llo_original>
